<compile_context>
chip_gen: v7x
topology: tpu7x:2x2x1
jax: 0.10.0
libtpu: 0.0.40
codegen_flags: <defaults>
</compile_context>

<pallas_src>
import functools

import jax
import jax.numpy as jnp
from jax import lax
from jax.experimental import pallas as pl
from jax.experimental.pallas import tpu as pltpu

# ------------------------- model / test configuration -----------------------
B, P, L = 2, 8, 8                      # batch, paragraphs, tokens per paragraph
VOCAB, H_EMB, HIDDEN = 64, 32, 32
PARENT_DIMS, PREV_DIMS = 4, 3
N = P + 1                              # nodes incl. dummy


def _round_up(x, m):
    return ((x + m - 1) // m) * m


# ----------------------------- fused Pallas kernel ---------------------------

def _fused_post_encoder_kernel(pooled_ref, enc_w_ref, enc_b_ref, dummy_ref,
                               proj_w_ref, proj_b_ref, fp_w_ref,
                               fr_w1h_ref, fr_w1t_ref, fr_b1_ref, fr_w2_ref, fr_b2_ref,
                               pr_w1h_ref, pr_w1t_ref, pr_b1_ref, pr_w2_ref, pr_b2_ref,
                               father_ids_ref, prev_ids_ref,
                               parent_logits_ref, prev_logits_ref,
                               father_labels_ref, prev_labels_ref,
                               *, n_nodes):
    f32 = jnp.float32
    NR, HE = pooled_ref.shape[1], pooled_ref.shape[2]
    H = enc_w_ref.shape[1]

    pooled = pooled_ref[0]                                                  # [NR, HE]

    # --- paragraph encoder (BERTEncoder stand-in) final projection ---
    enc = jnp.tanh(jnp.dot(pooled, enc_w_ref[...], preferred_element_type=f32)
                   + enc_b_ref[...])                                        # [NR, H]
    row_h = lax.broadcasted_iota(jnp.int32, (NR, H), 0)
    nodes = jnp.where(row_h == 0, dummy_ref[...], enc)                      # row 0 = dummy node

    # --- fused 6-way position-highlight projections: tanh(nodes @ W + b) ---
    proj = jnp.tanh(jnp.dot(nodes, proj_w_ref[...], preferred_element_type=f32)
                    + proj_b_ref[...])                                      # [NR, 6H]
    fp_head = proj[:, 0 * H:1 * H]
    fp_tail = proj[:, 1 * H:2 * H]
    fr_head = proj[:, 2 * H:3 * H]
    fr_tail = proj[:, 3 * H:4 * H]
    pr_head = proj[:, 4 * H:5 * H]
    pr_tail = proj[:, 5 * H:6 * H]

    # --- father pointer: bilinear head @ W @ tail^T, mask invalid candidates ---
    hw = jnp.dot(fp_head, fp_w_ref[...], preferred_element_type=f32)        # [NR, H]
    scores = lax.dot_general(hw, fp_tail, (((1,), (1,)), ((), ())),
                             preferred_element_type=f32)                    # [NR, NR]
    col = lax.broadcasted_iota(jnp.int32, (NR, NR), 1)
    rown = lax.broadcasted_iota(jnp.int32, (NR, NR), 0)
    scores = jnp.where(col < n_nodes, scores, jnp.float32(-1e30))

    # argmax over the candidate axis (first max index, matching torch/jnp)
    smax = jnp.max(scores, axis=1, keepdims=True)
    fathers = jnp.min(jnp.where(scores == smax, col, NR), axis=1, keepdims=True)  # [NR,1] i32
    ridx = lax.broadcasted_iota(jnp.int32, (NR, 1), 0)
    father_ids = jnp.where(ridx == 0, 0, fathers)                           # node 0 -> dummy

    # --- previous ids: last earlier node with the same father, else the father ---
    # TODO(synk): father_id_to_previous_id helper not provided; previous-sibling-
    # else-parent convention (same as previous version).
    fh = (col == father_ids).astype(f32)                                    # one-hot fathers
    same_father = lax.dot_general(fh, fh, (((1,), (1,)), ((), ())),
                                  preferred_element_type=f32) > 0.5         # [NR, NR]
    earlier = (col < rown) & (col >= 1)
    sib = jnp.max(jnp.where(same_father & earlier, col, 0), axis=1, keepdims=True)
    prev = jnp.where(sib != 0, sib, father_ids)
    prev_ids = jnp.where(ridx == 0, 0, prev)                                # [NR, 1]

    # --- in-kernel tail gathers via one-hot matmuls (exact, MXU) ---
    fh_prev = (col == prev_ids).astype(f32)
    fr_tail_g = jnp.dot(fh, fr_tail, preferred_element_type=f32)            # tails at father_ids
    pr_tail_g = jnp.dot(fh_prev, pr_tail, preferred_element_type=f32)       # tails at prev_ids

    # --- relation classifiers: tanh([head,tail] @ w1 + b1) @ w2 + b2 (split w1) ---
    h_fr = jnp.tanh(jnp.dot(fr_head, fr_w1h_ref[...], preferred_element_type=f32)
                    + jnp.dot(fr_tail_g, fr_w1t_ref[...], preferred_element_type=f32)
                    + fr_b1_ref[...])
    parent_logits = jnp.dot(h_fr, fr_w2_ref[...], preferred_element_type=f32) + fr_b2_ref[...]
    h_pr = jnp.tanh(jnp.dot(pr_head, pr_w1h_ref[...], preferred_element_type=f32)
                    + jnp.dot(pr_tail_g, pr_w1t_ref[...], preferred_element_type=f32)
                    + pr_b1_ref[...])
    prev_logits = jnp.dot(h_pr, pr_w2_ref[...], preferred_element_type=f32) + pr_b2_ref[...]

    # --- label argmax over the tiny class axes ---
    pc = parent_logits.shape[1]
    pcol = lax.broadcasted_iota(jnp.int32, (NR, pc), 1)
    pmax = jnp.max(parent_logits, axis=1, keepdims=True)
    father_labels = jnp.min(jnp.where(parent_logits == pmax, pcol, pc), axis=1, keepdims=True)
    qc = prev_logits.shape[1]
    qcol = lax.broadcasted_iota(jnp.int32, (NR, qc), 1)
    qmax = jnp.max(prev_logits, axis=1, keepdims=True)
    prev_labels = jnp.min(jnp.where(prev_logits == qmax, qcol, qc), axis=1, keepdims=True)

    father_ids_ref[0] = father_ids
    prev_ids_ref[0] = prev_ids
    parent_logits_ref[0] = parent_logits
    prev_logits_ref[0] = prev_logits
    father_labels_ref[0] = father_labels
    prev_labels_ref[0] = prev_labels


def fused_post_encoder(pooled_nodes, params, n_nodes):
    """One pallas_call for everything downstream of paragraph pooling."""
    Bb, NR, HE = pooled_nodes.shape
    H = params["enc_w"].shape[1]
    assert n_nodes <= NR
    if NR > 512:
        # TODO(synk): tile the node/candidate axis for very long documents.
        raise NotImplementedError("node axis > 512 needs a tiled candidate axis")

    def w(shape):
        return pl.BlockSpec(shape, lambda b: (0,) * len(shape))

    in_specs = [
        pl.BlockSpec((1, NR, HE), lambda b: (b, 0, 0)),   # pooled nodes (row 0 = dummy slot)
        w((HE, H)), w((1, H)), w((1, H)),                 # enc_w, enc_b, dummy
        w((H, 6 * H)), w((1, 6 * H)),                     # fused projection weights / bias
        w((H, H)),                                        # fp bilinear
        w((H, H)), w((H, H)), w((1, H)), w((H, PARENT_DIMS)), w((1, PARENT_DIMS)),   # fr cls
        w((H, H)), w((H, H)), w((1, H)), w((H, PREV_DIMS)), w((1, PREV_DIMS)),       # pr cls
    ]
    out_specs = [
        pl.BlockSpec((1, NR, 1), lambda b: (b, 0, 0)),
        pl.BlockSpec((1, NR, 1), lambda b: (b, 0, 0)),
        pl.BlockSpec((1, NR, PARENT_DIMS), lambda b: (b, 0, 0)),
        pl.BlockSpec((1, NR, PREV_DIMS), lambda b: (b, 0, 0)),
        pl.BlockSpec((1, NR, 1), lambda b: (b, 0, 0)),
        pl.BlockSpec((1, NR, 1), lambda b: (b, 0, 0)),
    ]
    out_shapes = (
        jax.ShapeDtypeStruct((Bb, NR, 1), jnp.int32),
        jax.ShapeDtypeStruct((Bb, NR, 1), jnp.int32),
        jax.ShapeDtypeStruct((Bb, NR, PARENT_DIMS), jnp.float32),
        jax.ShapeDtypeStruct((Bb, NR, PREV_DIMS), jnp.float32),
        jax.ShapeDtypeStruct((Bb, NR, 1), jnp.int32),
        jax.ShapeDtypeStruct((Bb, NR, 1), jnp.int32),
    )
    return pl.pallas_call(
        functools.partial(_fused_post_encoder_kernel, n_nodes=n_nodes),
        out_shape=out_shapes,
        grid=(Bb,),
        in_specs=in_specs,
        out_specs=out_specs,
        compiler_params=pltpu.CompilerParams(dimension_semantics=("parallel",)),
    )(pooled_nodes,
      params["enc_w"], params["enc_b"], params["dummy"],
      params["proj_w"], params["proj_b"], params["fp_bilinear"],
      params["fr_w1h"], params["fr_w1t"], params["fr_b1"], params["fr_w2"], params["fr_b2"],
      params["pr_w1h"], params["pr_w1t"], params["pr_b1"], params["pr_w2"], params["pr_b2"])


# ----------------------------- parameter init --------------------------------

def init_params(key):
    ks = iter(jax.random.split(key, 24))
    f32 = jnp.float32

    def rnd(shape, scale=0.05):
        return (jax.random.normal(next(ks), shape) * scale).astype(f32)

    p = {}
    p["tok_emb"] = rnd((VOCAB, H_EMB), 0.02)
    p["enc_w"] = rnd((H_EMB, HIDDEN))
    p["enc_b"] = jnp.zeros((1, HIDDEN), f32)
    p["dummy"] = rnd((1, HIDDEN), 0.02)                        # dummy_node_embedding
    # fused projections: [fp_head | fp_tail | fr_head | fr_tail | pr_head | pr_tail]
    p["proj_w"] = jnp.concatenate([rnd((HIDDEN, HIDDEN)) for _ in range(6)], axis=1)
    p["proj_b"] = jnp.zeros((1, 6 * HIDDEN), f32)
    p["fp_bilinear"] = rnd((HIDDEN, HIDDEN))
    for pre in ("fr", "pr"):
        p[pre + "_w1h"] = rnd((HIDDEN, HIDDEN))
        p[pre + "_w1t"] = rnd((HIDDEN, HIDDEN))
        p[pre + "_b1"] = jnp.zeros((1, HIDDEN), f32)
    p["fr_w2"] = rnd((HIDDEN, PARENT_DIMS))
    p["fr_b2"] = jnp.zeros((1, PARENT_DIMS), f32)
    p["pr_w2"] = rnd((HIDDEN, PREV_DIMS))
    p["pr_b2"] = jnp.zeros((1, PREV_DIMS), f32)
    return p


# ------------------------------- forward --------------------------------------

@jax.jit
def baseline_forward_predict(params, input_ids, input_mask):
    """Mirrors BaselineModel.predict (golden_* = None => no loss branch)."""
    Bb, Pp, _ = input_ids.shape
    Nn = Pp + 1
    NR = _round_up(max(Nn, 8), 8)                       # node axis padded to a sublane multiple

    # --- paragraph encoder front-end (BERTEncoder stand-in): embed + masked mean ---
    # TODO(synk): BERTEncoder internals not provided; synthetic embed+pool+projection encoder.
    tok = jnp.take(params["tok_emb"], input_ids, axis=0)                    # [B,P,L,He]
    m = input_mask.astype(jnp.float32)[..., None]
    pooled = (tok * m).sum(axis=2) / jnp.maximum(m.sum(axis=2), 1.0)        # [B,P,He]
    # node layout: row 0 reserved for the dummy node, rows 1..P = paragraphs, rest zero-pad
    pooled_nodes = jnp.pad(pooled, ((0, 0), (1, NR - 1 - Pp), (0, 0)))      # [B,NR,He]

    (father_ids_all, prev_ids_all, parent_logits, prev_logits,
     father_labels, prev_labels) = fused_post_encoder(pooled_nodes, params, Nn)

    fathers = father_ids_all[:, 1:Nn, 0]                                    # [B,P]
    previous_id_list = prev_ids_all[:, :Nn, 0]                              # [B,N]

    return {
        "father_ids": fathers - 1,
        "previous_ids": previous_id_list[:, 1:] - 1,
        "previous_label_logits": prev_logits[:, :Nn],
        "previous_labels": prev_labels[:, :Nn, 0],
        "father_labels": father_labels[:, :Nn, 0],
    }
    # TODO(synk): training losses (father / relation CE) need golden labels and the
    # unshown submodule loss definitions; predict-mode path is implemented exactly.


# ---------------------------------- main --------------------------------------

if __name__ == "__main__":
    key = jax.random.PRNGKey(0)
    k_param, k_ids, k_mask = jax.random.split(key, 3)

    params = init_params(k_param)

    input_ids = jax.random.randint(k_ids, (B, P, L), 0, VOCAB, dtype=jnp.int32)
    input_mask = (jax.random.uniform(k_mask, (B, P, L)) > 0.2).astype(jnp.int32)
    input_mask = input_mask.at[:, :, 0].set(1)   # guarantee >= 1 token per paragraph

    outputs = baseline_forward_predict(params, input_ids, input_mask)
    outputs = jax.tree_util.tree_map(jax.block_until_ready, outputs)

    assert outputs["father_ids"].shape == (B, P)
    assert outputs["previous_ids"].shape == (B, P)
    assert outputs["previous_label_logits"].shape == (B, P + 1, PREV_DIMS)
    assert outputs["previous_labels"].shape == (B, P + 1)
    assert outputs["father_labels"].shape == (B, P + 1)
    print("KERNEL_OK")
</pallas_src>

<mosaic_0001>
module attributes {stable_mosaic.version = 11 : i64} {
  func.func @_fused_post_encoder_kernel(%arg0: i32, %arg1: memref<1x16x32xf32, #tpu.memory_space<vmem>>, %arg2: memref<32x32xf32, #tpu.memory_space<vmem>>, %arg3: memref<1x32xf32, #tpu.memory_space<vmem>>, %arg4: memref<1x32xf32, #tpu.memory_space<vmem>>, %arg5: memref<32x192xf32, #tpu.memory_space<vmem>>, %arg6: memref<1x192xf32, #tpu.memory_space<vmem>>, %arg7: memref<32x32xf32, #tpu.memory_space<vmem>>, %arg8: memref<32x32xf32, #tpu.memory_space<vmem>>, %arg9: memref<32x32xf32, #tpu.memory_space<vmem>>, %arg10: memref<1x32xf32, #tpu.memory_space<vmem>>, %arg11: memref<32x4xf32, #tpu.memory_space<vmem>>, %arg12: memref<1x4xf32, #tpu.memory_space<vmem>>, %arg13: memref<32x32xf32, #tpu.memory_space<vmem>>, %arg14: memref<32x32xf32, #tpu.memory_space<vmem>>, %arg15: memref<1x32xf32, #tpu.memory_space<vmem>>, %arg16: memref<32x3xf32, #tpu.memory_space<vmem>>, %arg17: memref<1x3xf32, #tpu.memory_space<vmem>>, %arg18: memref<1x16x1xi32, #tpu.memory_space<vmem>>, %arg19: memref<1x16x1xi32, #tpu.memory_space<vmem>>, %arg20: memref<1x16x4xf32, #tpu.memory_space<vmem>>, %arg21: memref<1x16x3xf32, #tpu.memory_space<vmem>>, %arg22: memref<1x16x1xi32, #tpu.memory_space<vmem>>, %arg23: memref<1x16x1xi32, #tpu.memory_space<vmem>>) attributes {dimension_semantics = [#tpu.dimension_semantics<parallel>], iteration_bounds = array<i64: 2>, scalar_prefetch = 0 : i64, scratch_operands = 0 : i64, tpu.core_type = #tpu.core_type<tc>, window_params = [{transform_indices = @transform_0, window_bounds = array<i64: 1, 16, 32>}, {pipeline_mode = #tpu.pipeline_mode<synchronous>, transform_indices = @transform_1, window_bounds = array<i64: 32, 32>}, {pipeline_mode = #tpu.pipeline_mode<synchronous>, transform_indices = @transform_2, window_bounds = array<i64: 1, 32>}, {pipeline_mode = #tpu.pipeline_mode<synchronous>, transform_indices = @transform_3, window_bounds = array<i64: 1, 32>}, {pipeline_mode = #tpu.pipeline_mode<synchronous>, transform_indices = @transform_4, window_bounds = array<i64: 32, 192>}, {pipeline_mode = #tpu.pipeline_mode<synchronous>, transform_indices = @transform_5, window_bounds = array<i64: 1, 192>}, {pipeline_mode = #tpu.pipeline_mode<synchronous>, transform_indices = @transform_6, window_bounds = array<i64: 32, 32>}, {pipeline_mode = #tpu.pipeline_mode<synchronous>, transform_indices = @transform_7, window_bounds = array<i64: 32, 32>}, {pipeline_mode = #tpu.pipeline_mode<synchronous>, transform_indices = @transform_8, window_bounds = array<i64: 32, 32>}, {pipeline_mode = #tpu.pipeline_mode<synchronous>, transform_indices = @transform_9, window_bounds = array<i64: 1, 32>}, {pipeline_mode = #tpu.pipeline_mode<synchronous>, transform_indices = @transform_10, window_bounds = array<i64: 32, 4>}, {pipeline_mode = #tpu.pipeline_mode<synchronous>, transform_indices = @transform_11, window_bounds = array<i64: 1, 4>}, {pipeline_mode = #tpu.pipeline_mode<synchronous>, transform_indices = @transform_12, window_bounds = array<i64: 32, 32>}, {pipeline_mode = #tpu.pipeline_mode<synchronous>, transform_indices = @transform_13, window_bounds = array<i64: 32, 32>}, {pipeline_mode = #tpu.pipeline_mode<synchronous>, transform_indices = @transform_14, window_bounds = array<i64: 1, 32>}, {pipeline_mode = #tpu.pipeline_mode<synchronous>, transform_indices = @transform_15, window_bounds = array<i64: 32, 3>}, {pipeline_mode = #tpu.pipeline_mode<synchronous>, transform_indices = @transform_16, window_bounds = array<i64: 1, 3>}, {transform_indices = @transform_17, window_bounds = array<i64: 1, 16, 1>}, {transform_indices = @transform_18, window_bounds = array<i64: 1, 16, 1>}, {transform_indices = @transform_19, window_bounds = array<i64: 1, 16, 4>}, {transform_indices = @transform_20, window_bounds = array<i64: 1, 16, 3>}, {transform_indices = @transform_21, window_bounds = array<i64: 1, 16, 1>}, {transform_indices = @transform_22, window_bounds = array<i64: 1, 16, 1>}]} {
    %c0 = arith.constant 0 : index
    %c0_0 = arith.constant 0 : index
    %c0_1 = arith.constant 0 : index
    %0 = vector.load %arg1[%c0, %c0_0, %c0_1] : memref<1x16x32xf32, #tpu.memory_space<vmem>>, vector<1x16x32xf32>
    %1 = vector.shape_cast %0 : vector<1x16x32xf32> to vector<16x32xf32>
    %c0_2 = arith.constant 0 : index
    %c0_3 = arith.constant 0 : index
    %2 = vector.load %arg2[%c0_2, %c0_3] : memref<32x32xf32, #tpu.memory_space<vmem>>, vector<32x32xf32>
    %cst = arith.constant dense<0.000000e+00> : vector<16x32xf32>
    %3 = tpu.matmul %1, %2, %cst {dimension_numbers = #tpu.dot_dimension_numbers<[1], [0], [0], [1], [0, 0, 1, 1], [], []>} : vector<16x32xf32>, vector<32x32xf32>, vector<16x32xf32> -> vector<16x32xf32>
    %c0_4 = arith.constant 0 : index
    %c0_5 = arith.constant 0 : index
    %4 = vector.load %arg3[%c0_4, %c0_5] : memref<1x32xf32, #tpu.memory_space<vmem>>, vector<1x32xf32>
    %5 = vector.broadcast %4 : vector<1x32xf32> to vector<16x32xf32>
    %6 = arith.addf %3, %5 : vector<16x32xf32>
    %7 = math.tanh %6 : vector<16x32xf32>
    %8 = tpu.iota {dimensions = array<i32: 0>} : vector<16x32xi32>
    %c0_i32 = arith.constant 0 : i32
    %9 = vector.broadcast %c0_i32 : i32 to vector<16x32xi32>
    %10 = arith.cmpi eq, %8, %9 : vector<16x32xi32>
    %c0_6 = arith.constant 0 : index
    %c0_7 = arith.constant 0 : index
    %11 = vector.load %arg4[%c0_6, %c0_7] : memref<1x32xf32, #tpu.memory_space<vmem>>, vector<1x32xf32>
    %12 = vector.shape_cast %11 : vector<1x32xf32> to vector<1x32xf32>
    %13 = vector.broadcast %12 : vector<1x32xf32> to vector<16x32xf32>
    %14 = arith.select %10, %13, %7 : vector<16x32xi1>, vector<16x32xf32>
    %c0_8 = arith.constant 0 : index
    %c0_9 = arith.constant 0 : index
    %15 = vector.load %arg5[%c0_8, %c0_9] : memref<32x192xf32, #tpu.memory_space<vmem>>, vector<32x192xf32>
    %cst_10 = arith.constant dense<0.000000e+00> : vector<16x192xf32>
    %16 = tpu.matmul %14, %15, %cst_10 {dimension_numbers = #tpu.dot_dimension_numbers<[1], [0], [0], [1], [0, 0, 1, 1], [], []>} : vector<16x32xf32>, vector<32x192xf32>, vector<16x192xf32> -> vector<16x192xf32>
    %c0_11 = arith.constant 0 : index
    %c0_12 = arith.constant 0 : index
    %17 = vector.load %arg6[%c0_11, %c0_12] : memref<1x192xf32, #tpu.memory_space<vmem>>, vector<1x192xf32>
    %18 = vector.broadcast %17 : vector<1x192xf32> to vector<16x192xf32>
    %19 = arith.addf %16, %18 : vector<16x192xf32>
    %20 = math.tanh %19 : vector<16x192xf32>
    %21 = vector.extract_strided_slice %20 {offsets = [0, 0], sizes = [16, 32], strides = [1, 1]} : vector<16x192xf32> to vector<16x32xf32>
    %22 = vector.extract_strided_slice %20 {offsets = [0, 32], sizes = [16, 32], strides = [1, 1]} : vector<16x192xf32> to vector<16x32xf32>
    %23 = vector.extract_strided_slice %20 {offsets = [0, 64], sizes = [16, 32], strides = [1, 1]} : vector<16x192xf32> to vector<16x32xf32>
    %24 = vector.extract_strided_slice %20 {offsets = [0, 96], sizes = [16, 32], strides = [1, 1]} : vector<16x192xf32> to vector<16x32xf32>
    %25 = vector.extract_strided_slice %20 {offsets = [0, 128], sizes = [16, 32], strides = [1, 1]} : vector<16x192xf32> to vector<16x32xf32>
    %26 = vector.extract_strided_slice %20 {offsets = [0, 160], sizes = [16, 32], strides = [1, 1]} : vector<16x192xf32> to vector<16x32xf32>
    %c0_13 = arith.constant 0 : index
    %c0_14 = arith.constant 0 : index
    %27 = vector.load %arg7[%c0_13, %c0_14] : memref<32x32xf32, #tpu.memory_space<vmem>>, vector<32x32xf32>
    %cst_15 = arith.constant dense<0.000000e+00> : vector<16x32xf32>
    %28 = tpu.matmul %21, %27, %cst_15 {dimension_numbers = #tpu.dot_dimension_numbers<[1], [0], [0], [1], [0, 0, 1, 1], [], []>} : vector<16x32xf32>, vector<32x32xf32>, vector<16x32xf32> -> vector<16x32xf32>
    %cst_16 = arith.constant dense<0.000000e+00> : vector<16x16xf32>
    %29 = tpu.matmul %28, %22, %cst_16 {dimension_numbers = #tpu.dot_dimension_numbers<[1], [1], [0], [0], [0, 0, 1, 0], [], []>} : vector<16x32xf32>, vector<16x32xf32>, vector<16x16xf32> -> vector<16x16xf32>
    %30 = tpu.iota {dimensions = array<i32: 1>} : vector<16x16xi32>
    %31 = tpu.iota {dimensions = array<i32: 0>} : vector<16x16xi32>
    %c9_i32 = arith.constant 9 : i32
    %32 = vector.broadcast %c9_i32 : i32 to vector<16x16xi32>
    %33 = arith.cmpi slt, %30, %32 : vector<16x16xi32>
    %cst_17 = arith.constant -1.000000e+30 : f32
    %34 = vector.broadcast %cst_17 : f32 to vector<16x16xf32>
    %35 = arith.select %33, %29, %34 : vector<16x16xi1>, vector<16x16xf32>
    %cst_18 = arith.constant dense<0xFF800000> : vector<16xf32>
    %36 = vector.multi_reduction <maximumf>, %35, %cst_18 [1] : vector<16x16xf32> to vector<16xf32>
    %37 = vector.shape_cast %36 : vector<16xf32> to vector<16x1xf32>
    %38 = vector.broadcast %37 : vector<16x1xf32> to vector<16x16xf32>
    %39 = arith.cmpf oeq, %35, %38 : vector<16x16xf32>
    %c16_i32 = arith.constant 16 : i32
    %40 = vector.broadcast %c16_i32 : i32 to vector<16x16xi32>
    %41 = arith.select %39, %30, %40 : vector<16x16xi1>, vector<16x16xi32>
    %cst_19 = arith.constant dense<2147483647> : vector<16xi32>
    %42 = vector.multi_reduction <minsi>, %41, %cst_19 [1] : vector<16x16xi32> to vector<16xi32>
    %43 = vector.shape_cast %42 : vector<16xi32> to vector<16x1xi32>
    %44 = tpu.iota {dimensions = array<i32: 0>} : vector<16x1xi32>
    %c0_i32_20 = arith.constant 0 : i32
    %45 = vector.broadcast %c0_i32_20 : i32 to vector<16x1xi32>
    %46 = arith.cmpi eq, %44, %45 : vector<16x1xi32>
    %c0_i32_21 = arith.constant 0 : i32
    %47 = vector.broadcast %c0_i32_21 : i32 to vector<16x1xi32>
    %48 = arith.select %46, %47, %43 : vector<16x1xi1>, vector<16x1xi32>
    %49 = vector.broadcast %48 : vector<16x1xi32> to vector<16x16xi32>
    %50 = arith.cmpi eq, %30, %49 : vector<16x16xi32>
    %51 = arith.extui %50 : vector<16x16xi1> to vector<16x16xi32>
    %52 = arith.sitofp %51 : vector<16x16xi32> to vector<16x16xf32>
    %cst_22 = arith.constant dense<0.000000e+00> : vector<16x16xf32>
    %53 = tpu.matmul %52, %52, %cst_22 {dimension_numbers = #tpu.dot_dimension_numbers<[1], [1], [0], [0], [0, 0, 1, 0], [], []>} : vector<16x16xf32>, vector<16x16xf32>, vector<16x16xf32> -> vector<16x16xf32>
    %cst_23 = arith.constant 5.000000e-01 : f32
    %54 = vector.broadcast %cst_23 : f32 to vector<16x16xf32>
    %55 = arith.cmpf ogt, %53, %54 : vector<16x16xf32>
    %56 = arith.cmpi slt, %30, %31 : vector<16x16xi32>
    %c1_i32 = arith.constant 1 : i32
    %57 = vector.broadcast %c1_i32 : i32 to vector<16x16xi32>
    %58 = arith.cmpi sge, %30, %57 : vector<16x16xi32>
    %59 = arith.andi %56, %58 : vector<16x16xi1>
    %60 = arith.andi %55, %59 : vector<16x16xi1>
    %c0_i32_24 = arith.constant 0 : i32
    %61 = vector.broadcast %c0_i32_24 : i32 to vector<16x16xi32>
    %62 = arith.select %60, %30, %61 : vector<16x16xi1>, vector<16x16xi32>
    %cst_25 = arith.constant dense<-2147483648> : vector<16xi32>
    %63 = vector.multi_reduction <maxsi>, %62, %cst_25 [1] : vector<16x16xi32> to vector<16xi32>
    %64 = vector.shape_cast %63 : vector<16xi32> to vector<16x1xi32>
    %c0_i32_26 = arith.constant 0 : i32
    %65 = vector.broadcast %c0_i32_26 : i32 to vector<16x1xi32>
    %66 = arith.cmpi ne, %64, %65 : vector<16x1xi32>
    %67 = arith.select %66, %64, %48 : vector<16x1xi1>, vector<16x1xi32>
    %c0_i32_27 = arith.constant 0 : i32
    %68 = vector.broadcast %c0_i32_27 : i32 to vector<16x1xi32>
    %69 = arith.cmpi eq, %44, %68 : vector<16x1xi32>
    %c0_i32_28 = arith.constant 0 : i32
    %70 = vector.broadcast %c0_i32_28 : i32 to vector<16x1xi32>
    %71 = arith.select %69, %70, %67 : vector<16x1xi1>, vector<16x1xi32>
    %72 = vector.broadcast %71 : vector<16x1xi32> to vector<16x16xi32>
    %73 = arith.cmpi eq, %30, %72 : vector<16x16xi32>
    %74 = arith.extui %73 : vector<16x16xi1> to vector<16x16xi32>
    %75 = arith.sitofp %74 : vector<16x16xi32> to vector<16x16xf32>
    %cst_29 = arith.constant dense<0.000000e+00> : vector<16x32xf32>
    %76 = tpu.matmul %52, %24, %cst_29 {dimension_numbers = #tpu.dot_dimension_numbers<[1], [0], [0], [1], [0, 0, 1, 1], [], []>} : vector<16x16xf32>, vector<16x32xf32>, vector<16x32xf32> -> vector<16x32xf32>
    %cst_30 = arith.constant dense<0.000000e+00> : vector<16x32xf32>
    %77 = tpu.matmul %75, %26, %cst_30 {dimension_numbers = #tpu.dot_dimension_numbers<[1], [0], [0], [1], [0, 0, 1, 1], [], []>} : vector<16x16xf32>, vector<16x32xf32>, vector<16x32xf32> -> vector<16x32xf32>
    %c0_31 = arith.constant 0 : index
    %c0_32 = arith.constant 0 : index
    %78 = vector.load %arg8[%c0_31, %c0_32] : memref<32x32xf32, #tpu.memory_space<vmem>>, vector<32x32xf32>
    %cst_33 = arith.constant dense<0.000000e+00> : vector<16x32xf32>
    %79 = tpu.matmul %23, %78, %cst_33 {dimension_numbers = #tpu.dot_dimension_numbers<[1], [0], [0], [1], [0, 0, 1, 1], [], []>} : vector<16x32xf32>, vector<32x32xf32>, vector<16x32xf32> -> vector<16x32xf32>
    %c0_34 = arith.constant 0 : index
    %c0_35 = arith.constant 0 : index
    %80 = vector.load %arg9[%c0_34, %c0_35] : memref<32x32xf32, #tpu.memory_space<vmem>>, vector<32x32xf32>
    %cst_36 = arith.constant dense<0.000000e+00> : vector<16x32xf32>
    %81 = tpu.matmul %76, %80, %cst_36 {dimension_numbers = #tpu.dot_dimension_numbers<[1], [0], [0], [1], [0, 0, 1, 1], [], []>} : vector<16x32xf32>, vector<32x32xf32>, vector<16x32xf32> -> vector<16x32xf32>
    %82 = arith.addf %79, %81 : vector<16x32xf32>
    %c0_37 = arith.constant 0 : index
    %c0_38 = arith.constant 0 : index
    %83 = vector.load %arg10[%c0_37, %c0_38] : memref<1x32xf32, #tpu.memory_space<vmem>>, vector<1x32xf32>
    %84 = vector.broadcast %83 : vector<1x32xf32> to vector<16x32xf32>
    %85 = arith.addf %82, %84 : vector<16x32xf32>
    %86 = math.tanh %85 : vector<16x32xf32>
    %c0_39 = arith.constant 0 : index
    %c0_40 = arith.constant 0 : index
    %87 = vector.load %arg11[%c0_39, %c0_40] : memref<32x4xf32, #tpu.memory_space<vmem>>, vector<32x4xf32>
    %cst_41 = arith.constant dense<0.000000e+00> : vector<16x4xf32>
    %88 = tpu.matmul %86, %87, %cst_41 {dimension_numbers = #tpu.dot_dimension_numbers<[1], [0], [0], [1], [0, 0, 1, 1], [], []>} : vector<16x32xf32>, vector<32x4xf32>, vector<16x4xf32> -> vector<16x4xf32>
    %c0_42 = arith.constant 0 : index
    %c0_43 = arith.constant 0 : index
    %89 = vector.load %arg12[%c0_42, %c0_43] : memref<1x4xf32, #tpu.memory_space<vmem>>, vector<1x4xf32>
    %90 = vector.broadcast %89 : vector<1x4xf32> to vector<16x4xf32>
    %91 = arith.addf %88, %90 : vector<16x4xf32>
    %c0_44 = arith.constant 0 : index
    %c0_45 = arith.constant 0 : index
    %92 = vector.load %arg13[%c0_44, %c0_45] : memref<32x32xf32, #tpu.memory_space<vmem>>, vector<32x32xf32>
    %cst_46 = arith.constant dense<0.000000e+00> : vector<16x32xf32>
    %93 = tpu.matmul %25, %92, %cst_46 {dimension_numbers = #tpu.dot_dimension_numbers<[1], [0], [0], [1], [0, 0, 1, 1], [], []>} : vector<16x32xf32>, vector<32x32xf32>, vector<16x32xf32> -> vector<16x32xf32>
    %c0_47 = arith.constant 0 : index
    %c0_48 = arith.constant 0 : index
    %94 = vector.load %arg14[%c0_47, %c0_48] : memref<32x32xf32, #tpu.memory_space<vmem>>, vector<32x32xf32>
    %cst_49 = arith.constant dense<0.000000e+00> : vector<16x32xf32>
    %95 = tpu.matmul %77, %94, %cst_49 {dimension_numbers = #tpu.dot_dimension_numbers<[1], [0], [0], [1], [0, 0, 1, 1], [], []>} : vector<16x32xf32>, vector<32x32xf32>, vector<16x32xf32> -> vector<16x32xf32>
    %96 = arith.addf %93, %95 : vector<16x32xf32>
    %c0_50 = arith.constant 0 : index
    %c0_51 = arith.constant 0 : index
    %97 = vector.load %arg15[%c0_50, %c0_51] : memref<1x32xf32, #tpu.memory_space<vmem>>, vector<1x32xf32>
    %98 = vector.broadcast %97 : vector<1x32xf32> to vector<16x32xf32>
    %99 = arith.addf %96, %98 : vector<16x32xf32>
    %100 = math.tanh %99 : vector<16x32xf32>
    %c0_52 = arith.constant 0 : index
    %c0_53 = arith.constant 0 : index
    %101 = vector.load %arg16[%c0_52, %c0_53] : memref<32x3xf32, #tpu.memory_space<vmem>>, vector<32x3xf32>
    %cst_54 = arith.constant dense<0.000000e+00> : vector<16x3xf32>
    %102 = tpu.matmul %100, %101, %cst_54 {dimension_numbers = #tpu.dot_dimension_numbers<[1], [0], [0], [1], [0, 0, 1, 1], [], []>} : vector<16x32xf32>, vector<32x3xf32>, vector<16x3xf32> -> vector<16x3xf32>
    %c0_55 = arith.constant 0 : index
    %c0_56 = arith.constant 0 : index
    %103 = vector.load %arg17[%c0_55, %c0_56] : memref<1x3xf32, #tpu.memory_space<vmem>>, vector<1x3xf32>
    %104 = vector.broadcast %103 : vector<1x3xf32> to vector<16x3xf32>
    %105 = arith.addf %102, %104 : vector<16x3xf32>
    %106 = tpu.iota {dimensions = array<i32: 1>} : vector<16x4xi32>
    %cst_57 = arith.constant dense<0xFF800000> : vector<16xf32>
    %107 = vector.multi_reduction <maximumf>, %91, %cst_57 [1] : vector<16x4xf32> to vector<16xf32>
    %108 = vector.shape_cast %107 : vector<16xf32> to vector<16x1xf32>
    %109 = vector.broadcast %108 : vector<16x1xf32> to vector<16x4xf32>
    %110 = arith.cmpf oeq, %91, %109 : vector<16x4xf32>
    %c4_i32 = arith.constant 4 : i32
    %111 = vector.broadcast %c4_i32 : i32 to vector<16x4xi32>
    %112 = arith.select %110, %106, %111 : vector<16x4xi1>, vector<16x4xi32>
    %cst_58 = arith.constant dense<2147483647> : vector<16xi32>
    %113 = vector.multi_reduction <minsi>, %112, %cst_58 [1] : vector<16x4xi32> to vector<16xi32>
    %114 = vector.shape_cast %113 : vector<16xi32> to vector<16x1xi32>
    %115 = tpu.iota {dimensions = array<i32: 1>} : vector<16x3xi32>
    %cst_59 = arith.constant dense<0xFF800000> : vector<16xf32>
    %116 = vector.multi_reduction <maximumf>, %105, %cst_59 [1] : vector<16x3xf32> to vector<16xf32>
    %117 = vector.shape_cast %116 : vector<16xf32> to vector<16x1xf32>
    %118 = vector.broadcast %117 : vector<16x1xf32> to vector<16x3xf32>
    %119 = arith.cmpf oeq, %105, %118 : vector<16x3xf32>
    %c3_i32 = arith.constant 3 : i32
    %120 = vector.broadcast %c3_i32 : i32 to vector<16x3xi32>
    %121 = arith.select %119, %115, %120 : vector<16x3xi1>, vector<16x3xi32>
    %cst_60 = arith.constant dense<2147483647> : vector<16xi32>
    %122 = vector.multi_reduction <minsi>, %121, %cst_60 [1] : vector<16x3xi32> to vector<16xi32>
    %123 = vector.shape_cast %122 : vector<16xi32> to vector<16x1xi32>
    %c0_61 = arith.constant 0 : index
    %c0_62 = arith.constant 0 : index
    %c0_63 = arith.constant 0 : index
    %124 = vector.load %arg18[%c0_61, %c0_62, %c0_63] : memref<1x16x1xi32, #tpu.memory_space<vmem>>, vector<1x16x1xi32>
    %125 = vector.shape_cast %124 : vector<1x16x1xi32> to vector<16x1xi32>
    %126 = vector.shape_cast %48 : vector<16x1xi32> to vector<1x16x1xi32>
    tpu.vector_store %arg18[%c0_61, %c0_62, %c0_63], %126 {strides = array<i32>} : memref<1x16x1xi32, #tpu.memory_space<vmem>>, vector<1x16x1xi32>,
    %c0_64 = arith.constant 0 : index
    %c0_65 = arith.constant 0 : index
    %c0_66 = arith.constant 0 : index
    %127 = vector.load %arg19[%c0_64, %c0_65, %c0_66] : memref<1x16x1xi32, #tpu.memory_space<vmem>>, vector<1x16x1xi32>
    %128 = vector.shape_cast %127 : vector<1x16x1xi32> to vector<16x1xi32>
    %129 = vector.shape_cast %71 : vector<16x1xi32> to vector<1x16x1xi32>
    tpu.vector_store %arg19[%c0_64, %c0_65, %c0_66], %129 {strides = array<i32>} : memref<1x16x1xi32, #tpu.memory_space<vmem>>, vector<1x16x1xi32>,
    %c0_67 = arith.constant 0 : index
    %c0_68 = arith.constant 0 : index
    %c0_69 = arith.constant 0 : index
    %130 = vector.load %arg20[%c0_67, %c0_68, %c0_69] : memref<1x16x4xf32, #tpu.memory_space<vmem>>, vector<1x16x4xf32>
    %131 = vector.shape_cast %130 : vector<1x16x4xf32> to vector<16x4xf32>
    %132 = vector.shape_cast %91 : vector<16x4xf32> to vector<1x16x4xf32>
    tpu.vector_store %arg20[%c0_67, %c0_68, %c0_69], %132 {strides = array<i32>} : memref<1x16x4xf32, #tpu.memory_space<vmem>>, vector<1x16x4xf32>,
    %c0_70 = arith.constant 0 : index
    %c0_71 = arith.constant 0 : index
    %c0_72 = arith.constant 0 : index
    %133 = vector.load %arg21[%c0_70, %c0_71, %c0_72] : memref<1x16x3xf32, #tpu.memory_space<vmem>>, vector<1x16x3xf32>
    %134 = vector.shape_cast %133 : vector<1x16x3xf32> to vector<16x3xf32>
    %135 = vector.shape_cast %105 : vector<16x3xf32> to vector<1x16x3xf32>
    tpu.vector_store %arg21[%c0_70, %c0_71, %c0_72], %135 {strides = array<i32>} : memref<1x16x3xf32, #tpu.memory_space<vmem>>, vector<1x16x3xf32>,
    %c0_73 = arith.constant 0 : index
    %c0_74 = arith.constant 0 : index
    %c0_75 = arith.constant 0 : index
    %136 = vector.load %arg22[%c0_73, %c0_74, %c0_75] : memref<1x16x1xi32, #tpu.memory_space<vmem>>, vector<1x16x1xi32>
    %137 = vector.shape_cast %136 : vector<1x16x1xi32> to vector<16x1xi32>
    %138 = vector.shape_cast %114 : vector<16x1xi32> to vector<1x16x1xi32>
    tpu.vector_store %arg22[%c0_73, %c0_74, %c0_75], %138 {strides = array<i32>} : memref<1x16x1xi32, #tpu.memory_space<vmem>>, vector<1x16x1xi32>,
    %c0_76 = arith.constant 0 : index
    %c0_77 = arith.constant 0 : index
    %c0_78 = arith.constant 0 : index
    %139 = vector.load %arg23[%c0_76, %c0_77, %c0_78] : memref<1x16x1xi32, #tpu.memory_space<vmem>>, vector<1x16x1xi32>
    %140 = vector.shape_cast %139 : vector<1x16x1xi32> to vector<16x1xi32>
    %141 = vector.shape_cast %123 : vector<16x1xi32> to vector<1x16x1xi32>
    tpu.vector_store %arg23[%c0_76, %c0_77, %c0_78], %141 {strides = array<i32>} : memref<1x16x1xi32, #tpu.memory_space<vmem>>, vector<1x16x1xi32>,
    return
  }
  func.func @transform_0(%arg0: i32) -> (i32, i32, i32) {
    %c0_i32 = arith.constant 0 : i32
    %c0_i32_0 = arith.constant 0 : i32
    %c0_i32_1 = arith.constant 0 : i32
    return %arg0, %c0_i32, %c0_i32_0 : i32, i32, i32
  }
  func.func @transform_1(%arg0: i32) -> (i32, i32) {
    %c0_i32 = arith.constant 0 : i32
    %c0_i32_0 = arith.constant 0 : i32
    %c0_i32_1 = arith.constant 0 : i32
    return %c0_i32, %c0_i32_0 : i32, i32
  }
  func.func @transform_2(%arg0: i32) -> (i32, i32) {
    %c0_i32 = arith.constant 0 : i32
    %c0_i32_0 = arith.constant 0 : i32
    %c0_i32_1 = arith.constant 0 : i32
    return %c0_i32, %c0_i32_0 : i32, i32
  }
  func.func @transform_3(%arg0: i32) -> (i32, i32) {
    %c0_i32 = arith.constant 0 : i32
    %c0_i32_0 = arith.constant 0 : i32
    %c0_i32_1 = arith.constant 0 : i32
    return %c0_i32, %c0_i32_0 : i32, i32
  }
  func.func @transform_4(%arg0: i32) -> (i32, i32) {
    %c0_i32 = arith.constant 0 : i32
    %c0_i32_0 = arith.constant 0 : i32
    %c0_i32_1 = arith.constant 0 : i32
    return %c0_i32, %c0_i32_0 : i32, i32
  }
  func.func @transform_5(%arg0: i32) -> (i32, i32) {
    %c0_i32 = arith.constant 0 : i32
    %c0_i32_0 = arith.constant 0 : i32
    %c0_i32_1 = arith.constant 0 : i32
    return %c0_i32, %c0_i32_0 : i32, i32
  }
  func.func @transform_6(%arg0: i32) -> (i32, i32) {
    %c0_i32 = arith.constant 0 : i32
    %c0_i32_0 = arith.constant 0 : i32
    %c0_i32_1 = arith.constant 0 : i32
    return %c0_i32, %c0_i32_0 : i32, i32
  }
  func.func @transform_7(%arg0: i32) -> (i32, i32) {
    %c0_i32 = arith.constant 0 : i32
    %c0_i32_0 = arith.constant 0 : i32
    %c0_i32_1 = arith.constant 0 : i32
    return %c0_i32, %c0_i32_0 : i32, i32
  }
  func.func @transform_8(%arg0: i32) -> (i32, i32) {
    %c0_i32 = arith.constant 0 : i32
    %c0_i32_0 = arith.constant 0 : i32
    %c0_i32_1 = arith.constant 0 : i32
    return %c0_i32, %c0_i32_0 : i32, i32
  }
  func.func @transform_9(%arg0: i32) -> (i32, i32) {
    %c0_i32 = arith.constant 0 : i32
    %c0_i32_0 = arith.constant 0 : i32
    %c0_i32_1 = arith.constant 0 : i32
    return %c0_i32, %c0_i32_0 : i32, i32
  }
  func.func @transform_10(%arg0: i32) -> (i32, i32) {
    %c0_i32 = arith.constant 0 : i32
    %c0_i32_0 = arith.constant 0 : i32
    %c0_i32_1 = arith.constant 0 : i32
    return %c0_i32, %c0_i32_0 : i32, i32
  }
  func.func @transform_11(%arg0: i32) -> (i32, i32) {
    %c0_i32 = arith.constant 0 : i32
    %c0_i32_0 = arith.constant 0 : i32
    %c0_i32_1 = arith.constant 0 : i32
    return %c0_i32, %c0_i32_0 : i32, i32
  }
  func.func @transform_12(%arg0: i32) -> (i32, i32) {
    %c0_i32 = arith.constant 0 : i32
    %c0_i32_0 = arith.constant 0 : i32
    %c0_i32_1 = arith.constant 0 : i32
    return %c0_i32, %c0_i32_0 : i32, i32
  }
  func.func @transform_13(%arg0: i32) -> (i32, i32) {
    %c0_i32 = arith.constant 0 : i32
    %c0_i32_0 = arith.constant 0 : i32
    %c0_i32_1 = arith.constant 0 : i32
    return %c0_i32, %c0_i32_0 : i32, i32
  }
  func.func @transform_14(%arg0: i32) -> (i32, i32) {
    %c0_i32 = arith.constant 0 : i32
    %c0_i32_0 = arith.constant 0 : i32
    %c0_i32_1 = arith.constant 0 : i32
    return %c0_i32, %c0_i32_0 : i32, i32
  }
  func.func @transform_15(%arg0: i32) -> (i32, i32) {
    %c0_i32 = arith.constant 0 : i32
    %c0_i32_0 = arith.constant 0 : i32
    %c0_i32_1 = arith.constant 0 : i32
    return %c0_i32, %c0_i32_0 : i32, i32
  }
  func.func @transform_16(%arg0: i32) -> (i32, i32) {
    %c0_i32 = arith.constant 0 : i32
    %c0_i32_0 = arith.constant 0 : i32
    %c0_i32_1 = arith.constant 0 : i32
    return %c0_i32, %c0_i32_0 : i32, i32
  }
  func.func @transform_17(%arg0: i32) -> (i32, i32, i32) {
    %c0_i32 = arith.constant 0 : i32
    %c0_i32_0 = arith.constant 0 : i32
    %c0_i32_1 = arith.constant 0 : i32
    return %arg0, %c0_i32, %c0_i32_0 : i32, i32, i32
  }
  func.func @transform_18(%arg0: i32) -> (i32, i32, i32) {
    %c0_i32 = arith.constant 0 : i32
    %c0_i32_0 = arith.constant 0 : i32
    %c0_i32_1 = arith.constant 0 : i32
    return %arg0, %c0_i32, %c0_i32_0 : i32, i32, i32
  }
  func.func @transform_19(%arg0: i32) -> (i32, i32, i32) {
    %c0_i32 = arith.constant 0 : i32
    %c0_i32_0 = arith.constant 0 : i32
    %c0_i32_1 = arith.constant 0 : i32
    return %arg0, %c0_i32, %c0_i32_0 : i32, i32, i32
  }
  func.func @transform_20(%arg0: i32) -> (i32, i32, i32) {
    %c0_i32 = arith.constant 0 : i32
    %c0_i32_0 = arith.constant 0 : i32
    %c0_i32_1 = arith.constant 0 : i32
    return %arg0, %c0_i32, %c0_i32_0 : i32, i32, i32
  }
  func.func @transform_21(%arg0: i32) -> (i32, i32, i32) {
    %c0_i32 = arith.constant 0 : i32
    %c0_i32_0 = arith.constant 0 : i32
    %c0_i32_1 = arith.constant 0 : i32
    return %arg0, %c0_i32, %c0_i32_0 : i32, i32, i32
  }
  func.func @transform_22(%arg0: i32) -> (i32, i32, i32) {
    %c0_i32 = arith.constant 0 : i32
    %c0_i32_0 = arith.constant 0 : i32
    %c0_i32_1 = arith.constant 0 : i32
    return %arg0, %c0_i32, %c0_i32_0 : i32, i32, i32
  }
}

</mosaic_0001>

<llo_original>
// kernel: baseline_forward_predict.1
$region0: #{baseline_forward_predict.1}
  #allocation0 [shape = 'u32[]', space=smem, size = 0x4, offset = 0x4, fixed_abs, tag = 'smem constant byte address 0x4 - core index']
  #allocation1 [shape = 'u32[144,128]{1,0:T(1,128)}', space=vmem, size = 0x12000, scoped, tag = 'internal scratch']
  %s0 = inlined_call_operand.vmem [shape: f32[2,16,32], index: 0, kind: input, shape index: {}]
  %s1 = inlined_call_operand.vmem [shape: f32[32,32], index: 1, kind: input, shape index: {}]
  %s2 = inlined_call_operand.vmem [shape: f32[1,32], index: 2, kind: input, shape index: {}]
  %s3 = inlined_call_operand.vmem [shape: f32[1,32], index: 3, kind: input, shape index: {}]
  %s4 = inlined_call_operand.vmem [shape: f32[32,192], index: 4, kind: input, shape index: {}]
  %s5 = inlined_call_operand.vmem [shape: f32[1,192], index: 5, kind: input, shape index: {}]
  %s6 = inlined_call_operand.vmem [shape: f32[32,32], index: 6, kind: input, shape index: {}]
  %s7 = inlined_call_operand.vmem [shape: f32[32,32], index: 7, kind: input, shape index: {}]
  %s8 = inlined_call_operand.vmem [shape: f32[32,32], index: 8, kind: input, shape index: {}]
  %s9 = inlined_call_operand.vmem [shape: f32[1,32], index: 9, kind: input, shape index: {}]
  %s10 = inlined_call_operand.vmem [shape: f32[32,4], index: 10, kind: input, shape index: {}]
  %s11 = inlined_call_operand.vmem [shape: f32[1,4], index: 11, kind: input, shape index: {}]
  %s12 = inlined_call_operand.vmem [shape: f32[32,32], index: 12, kind: input, shape index: {}]
  %s13 = inlined_call_operand.vmem [shape: f32[32,32], index: 13, kind: input, shape index: {}]
  %s14 = inlined_call_operand.vmem [shape: f32[1,32], index: 14, kind: input, shape index: {}]
  %s15 = inlined_call_operand.vmem [shape: f32[32,3], index: 15, kind: input, shape index: {}]
  %s16 = inlined_call_operand.vmem [shape: f32[1,3], index: 16, kind: input, shape index: {}]
  %s17 = inlined_call_operand.vmem [shape: s32[2,16,1], index: 17, kind: output, shape index: {0}]
  %s18 = inlined_call_operand.vmem [shape: s32[2,16,1], index: 18, kind: output, shape index: {1}]
  %s19 = inlined_call_operand.hbm [shape: f32[2,16,4], index: 19, kind: output, shape index: {2}]
  %s20 = inlined_call_operand.vmem [shape: f32[2,16,3], index: 20, kind: output, shape index: {3}]
  %s21 = inlined_call_operand.vmem [shape: s32[2,16,1], index: 21, kind: output, shape index: {4}]
  %s22 = inlined_call_operand.vmem [shape: s32[2,16,1], index: 22, kind: output, shape index: {5}]
  %23 = xla_tuple %s17, %s18, %s19, %s20, %s21, %s22
  %s24 = sld [smem:[#allocation0]]
  $region141: #{baseline_forward_predict.1} parent=0
    _
  %s26 = ssub.s32 1, %s24
  %s27 = scalar_select 0, %s26, %s24
  $region1: #{baseline_forward_predict.1} parent=0
    #allocation2 [shape = 'u8[16384]{0}', space=vmem, size = 0x4000, scoped, tag = 'output window, operand 2']
    #allocation3 [shape = 's32[2]{0}', space=sflag, size = 0x8, scoped, tag = 'scoped memory for baseline_forward_predict.1']
    %28 = vsyncpa [#allocation3], 0
    %s29 = scalar_lea.sflag [#allocation3], 1
    %30 = vsyncpa %s29, 0
    loop: start=0, step=1, limit=4
    $region2: #{baseline_forward_predict.1} parent=1 // loop_pre_header
      _
    $region3: #{baseline_forward_predict.1} parent=1 // loop_header
      %s32 = sphi 0, %s36
      %p33 = scmp.ge.s32.totalorder %s32, 4
      %s42 = sphi 0, %s44
      %s45 = sphi 0, %s42
      %s46 = sphi 0, %s45
      %s62 = sphi 0, %s46
      %s66 = sphi 0, %s66
      %s68 = sphi 0, %s66
      %s69 = sphi 0, %s68
      %s83 = sphi 0, %s69
      %s87 = sphi 0, %s87
      %s89 = sphi 0, %s87
      %s90 = sphi 0, %s89
      %s104 = sphi 0, %s90
      %s108 = sphi 0, %s108
      %s110 = sphi 0, %s108
      %s111 = sphi 0, %s110
      %s125 = sphi 0, %s111
      %s129 = sphi 0, %s129
      %s131 = sphi 0, %s129
      %s132 = sphi 0, %s131
      %s146 = sphi 0, %s132
      %s150 = sphi 0, %s150
      %s152 = sphi 0, %s150
      %s153 = sphi 0, %s152
      %s167 = sphi 0, %s153
      %s171 = sphi 0, %s171
      %s173 = sphi 0, %s171
      %s174 = sphi 0, %s173
      %s188 = sphi 0, %s174
      %s192 = sphi 0, %s192
      %s194 = sphi 0, %s192
      %s195 = sphi 0, %s194
      %s209 = sphi 0, %s195
      %s213 = sphi 0, %s213
      %s215 = sphi 0, %s213
      %s216 = sphi 0, %s215
      %s230 = sphi 0, %s216
      %s234 = sphi 0, %s234
      %s236 = sphi 0, %s234
      %s237 = sphi 0, %s236
      %s251 = sphi 0, %s237
      %s255 = sphi 0, %s255
      %s257 = sphi 0, %s255
      %s258 = sphi 0, %s257
      %s272 = sphi 0, %s258
      %s276 = sphi 0, %s276
      %s278 = sphi 0, %s276
      %s279 = sphi 0, %s278
      %s293 = sphi 0, %s279
      %s297 = sphi 0, %s297
      %s299 = sphi 0, %s297
      %s300 = sphi 0, %s299
      %s314 = sphi 0, %s300
      %s318 = sphi 0, %s318
      %s320 = sphi 0, %s318
      %s321 = sphi 0, %s320
      %s335 = sphi 0, %s321
      %s339 = sphi 0, %s339
      %s341 = sphi 0, %s339
      %s342 = sphi 0, %s341
      %s356 = sphi 0, %s342
      %s360 = sphi 0, %s360
      %s362 = sphi 0, %s360
      %s363 = sphi 0, %s362
      %s377 = sphi 0, %s363
      %s381 = sphi 0, %s381
      %s383 = sphi 0, %s381
      %s384 = sphi 0, %s383
      %s398 = sphi 0, %s384
      %s404 = sphi 0, %s406
      %s407 = sphi 0, %s404
      %s408 = sphi 0, %s407
      %s424 = sphi 0, %s408
      %s430 = sphi 0, %s432
      %s433 = sphi 0, %s430
      %s434 = sphi 0, %s433
      %s450 = sphi 0, %s434
      %s456 = sphi 0, %s458
      %s459 = sphi 0, %s456
      %s460 = sphi 0, %s459
      %s476 = sphi 0, %s460
      %s482 = sphi 0, %s484
      %s485 = sphi 0, %s482
      %s486 = sphi 0, %s485
      %s502 = sphi 0, %s486
      %s508 = sphi 0, %s510
      %s511 = sphi 0, %s508
      %s512 = sphi 0, %s511
      %s528 = sphi 0, %s512
      %s534 = sphi 0, %s536
      %s537 = sphi 0, %s534
      %s538 = sphi 0, %s537
      %s554 = sphi 0, %s538
    $region4: #{baseline_forward_predict.1} parent=1 // loop_header_branch
      %35 = sbr.rel (%p33) target = $region8
    $region5: #{baseline_forward_predict.1} parent=1 // loop_body
      %s37 = ssub.s32 %s32, 1
      %s38 = ssub.s32 %s32, 2
      %s39 = sadd.s32 %s32, 1
      %s40 = ssub.s32 %s32, %s39
      %p41 = scmp.eq.s32.totalorder %s40, 0
      %s43 = sadd.s32 %s42, 1
      %s44 = scalar_select %p41, %s42, %s43
      %p47 = pneg %p41
      %p48 = scmp.eq.s32.totalorder %s32, 1
      %p49 = por %p47, %p48
      %p50 = scmp.ne.s32.totalorder %s42, %s45
      %p51 = scmp.eq.s32.totalorder %s32, 0
      %p52 = por %p50, %p51
      %p53 = scmp.ne.s32.totalorder %s42, %s45
      %p54 = scmp.eq.s32.totalorder %s37, 1
      %p55 = por %p53, %p54
      %p56 = scmp.ne.s32.totalorder %s45, %s46
      %p57 = scmp.eq.s32.totalorder %s37, 0
      %p58 = por %p56, %p57
      %p59 = scmp.ne.s32.totalorder %s45, %s46
      %p60 = scmp.eq.s32.totalorder %s38, 1
      %p61 = por %p59, %p60
      %p63 = scmp.ne.s32.totalorder %s46, %s62
      %p64 = scmp.eq.s32.totalorder %s38, 0
      %p65 = por %p63, %p64
      %s67 = sadd.s32 %s66, 1
      %p70 = scmp.eq.s32.totalorder %s32, 1
      %p71 = scmp.ne.s32.totalorder %s66, %s68
      %p72 = scmp.eq.s32.totalorder %s32, 0
      %p73 = por %p71, %p72
      %p74 = scmp.ne.s32.totalorder %s66, %s68
      %p75 = scmp.eq.s32.totalorder %s37, 1
      %p76 = por %p74, %p75
      %p77 = scmp.ne.s32.totalorder %s68, %s69
      %p78 = scmp.eq.s32.totalorder %s37, 0
      %p79 = por %p77, %p78
      %p80 = scmp.ne.s32.totalorder %s68, %s69
      %p81 = scmp.eq.s32.totalorder %s38, 1
      %p82 = por %p80, %p81
      %p84 = scmp.ne.s32.totalorder %s69, %s83
      %p85 = scmp.eq.s32.totalorder %s38, 0
      %p86 = por %p84, %p85
      %s88 = sadd.s32 %s87, 1
      %p91 = scmp.eq.s32.totalorder %s32, 1
      %p92 = scmp.ne.s32.totalorder %s87, %s89
      %p93 = scmp.eq.s32.totalorder %s32, 0
      %p94 = por %p92, %p93
      %p95 = scmp.ne.s32.totalorder %s87, %s89
      %p96 = scmp.eq.s32.totalorder %s37, 1
      %p97 = por %p95, %p96
      %p98 = scmp.ne.s32.totalorder %s89, %s90
      %p99 = scmp.eq.s32.totalorder %s37, 0
      %p100 = por %p98, %p99
      %p101 = scmp.ne.s32.totalorder %s89, %s90
      %p102 = scmp.eq.s32.totalorder %s38, 1
      %p103 = por %p101, %p102
      %p105 = scmp.ne.s32.totalorder %s90, %s104
      %p106 = scmp.eq.s32.totalorder %s38, 0
      %p107 = por %p105, %p106
      %s109 = sadd.s32 %s108, 1
      %p112 = scmp.eq.s32.totalorder %s32, 1
      %p113 = scmp.ne.s32.totalorder %s108, %s110
      %p114 = scmp.eq.s32.totalorder %s32, 0
      %p115 = por %p113, %p114
      %p116 = scmp.ne.s32.totalorder %s108, %s110
      %p117 = scmp.eq.s32.totalorder %s37, 1
      %p118 = por %p116, %p117
      %p119 = scmp.ne.s32.totalorder %s110, %s111
      %p120 = scmp.eq.s32.totalorder %s37, 0
      %p121 = por %p119, %p120
      %p122 = scmp.ne.s32.totalorder %s110, %s111
      %p123 = scmp.eq.s32.totalorder %s38, 1
      %p124 = por %p122, %p123
      %p126 = scmp.ne.s32.totalorder %s111, %s125
      %p127 = scmp.eq.s32.totalorder %s38, 0
      %p128 = por %p126, %p127
      %s130 = sadd.s32 %s129, 1
      %p133 = scmp.eq.s32.totalorder %s32, 1
      %p134 = scmp.ne.s32.totalorder %s129, %s131
      %p135 = scmp.eq.s32.totalorder %s32, 0
      %p136 = por %p134, %p135
      %p137 = scmp.ne.s32.totalorder %s129, %s131
      %p138 = scmp.eq.s32.totalorder %s37, 1
      %p139 = por %p137, %p138
      %p140 = scmp.ne.s32.totalorder %s131, %s132
      %p141 = scmp.eq.s32.totalorder %s37, 0
      %p142 = por %p140, %p141
      %p143 = scmp.ne.s32.totalorder %s131, %s132
      %p144 = scmp.eq.s32.totalorder %s38, 1
      %p145 = por %p143, %p144
      %p147 = scmp.ne.s32.totalorder %s132, %s146
      %p148 = scmp.eq.s32.totalorder %s38, 0
      %p149 = por %p147, %p148
      %s151 = sadd.s32 %s150, 1
      %p154 = scmp.eq.s32.totalorder %s32, 1
      %p155 = scmp.ne.s32.totalorder %s150, %s152
      %p156 = scmp.eq.s32.totalorder %s32, 0
      %p157 = por %p155, %p156
      %p158 = scmp.ne.s32.totalorder %s150, %s152
      %p159 = scmp.eq.s32.totalorder %s37, 1
      %p160 = por %p158, %p159
      %p161 = scmp.ne.s32.totalorder %s152, %s153
      %p162 = scmp.eq.s32.totalorder %s37, 0
      %p163 = por %p161, %p162
      %p164 = scmp.ne.s32.totalorder %s152, %s153
      %p165 = scmp.eq.s32.totalorder %s38, 1
      %p166 = por %p164, %p165
      %p168 = scmp.ne.s32.totalorder %s153, %s167
      %p169 = scmp.eq.s32.totalorder %s38, 0
      %p170 = por %p168, %p169
      %s172 = sadd.s32 %s171, 1
      %p175 = scmp.eq.s32.totalorder %s32, 1
      %p176 = scmp.ne.s32.totalorder %s171, %s173
      %p177 = scmp.eq.s32.totalorder %s32, 0
      %p178 = por %p176, %p177
      %p179 = scmp.ne.s32.totalorder %s171, %s173
      %p180 = scmp.eq.s32.totalorder %s37, 1
      %p181 = por %p179, %p180
      %p182 = scmp.ne.s32.totalorder %s173, %s174
      %p183 = scmp.eq.s32.totalorder %s37, 0
      %p184 = por %p182, %p183
      %p185 = scmp.ne.s32.totalorder %s173, %s174
      %p186 = scmp.eq.s32.totalorder %s38, 1
      %p187 = por %p185, %p186
      %p189 = scmp.ne.s32.totalorder %s174, %s188
      %p190 = scmp.eq.s32.totalorder %s38, 0
      %p191 = por %p189, %p190
      %s193 = sadd.s32 %s192, 1
      %p196 = scmp.eq.s32.totalorder %s32, 1
      %p197 = scmp.ne.s32.totalorder %s192, %s194
      %p198 = scmp.eq.s32.totalorder %s32, 0
      %p199 = por %p197, %p198
      %p200 = scmp.ne.s32.totalorder %s192, %s194
      %p201 = scmp.eq.s32.totalorder %s37, 1
      %p202 = por %p200, %p201
      %p203 = scmp.ne.s32.totalorder %s194, %s195
      %p204 = scmp.eq.s32.totalorder %s37, 0
      %p205 = por %p203, %p204
      %p206 = scmp.ne.s32.totalorder %s194, %s195
      %p207 = scmp.eq.s32.totalorder %s38, 1
      %p208 = por %p206, %p207
      %p210 = scmp.ne.s32.totalorder %s195, %s209
      %p211 = scmp.eq.s32.totalorder %s38, 0
      %p212 = por %p210, %p211
      %s214 = sadd.s32 %s213, 1
      %p217 = scmp.eq.s32.totalorder %s32, 1
      %p218 = scmp.ne.s32.totalorder %s213, %s215
      %p219 = scmp.eq.s32.totalorder %s32, 0
      %p220 = por %p218, %p219
      %p221 = scmp.ne.s32.totalorder %s213, %s215
      %p222 = scmp.eq.s32.totalorder %s37, 1
      %p223 = por %p221, %p222
      %p224 = scmp.ne.s32.totalorder %s215, %s216
      %p225 = scmp.eq.s32.totalorder %s37, 0
      %p226 = por %p224, %p225
      %p227 = scmp.ne.s32.totalorder %s215, %s216
      %p228 = scmp.eq.s32.totalorder %s38, 1
      %p229 = por %p227, %p228
      %p231 = scmp.ne.s32.totalorder %s216, %s230
      %p232 = scmp.eq.s32.totalorder %s38, 0
      %p233 = por %p231, %p232
      %s235 = sadd.s32 %s234, 1
      %p238 = scmp.eq.s32.totalorder %s32, 1
      %p239 = scmp.ne.s32.totalorder %s234, %s236
      %p240 = scmp.eq.s32.totalorder %s32, 0
      %p241 = por %p239, %p240
      %p242 = scmp.ne.s32.totalorder %s234, %s236
      %p243 = scmp.eq.s32.totalorder %s37, 1
      %p244 = por %p242, %p243
      %p245 = scmp.ne.s32.totalorder %s236, %s237
      %p246 = scmp.eq.s32.totalorder %s37, 0
      %p247 = por %p245, %p246
      %p248 = scmp.ne.s32.totalorder %s236, %s237
      %p249 = scmp.eq.s32.totalorder %s38, 1
      %p250 = por %p248, %p249
      %p252 = scmp.ne.s32.totalorder %s237, %s251
      %p253 = scmp.eq.s32.totalorder %s38, 0
      %p254 = por %p252, %p253
      %s256 = sadd.s32 %s255, 1
      %p259 = scmp.eq.s32.totalorder %s32, 1
      %p260 = scmp.ne.s32.totalorder %s255, %s257
      %p261 = scmp.eq.s32.totalorder %s32, 0
      %p262 = por %p260, %p261
      %p263 = scmp.ne.s32.totalorder %s255, %s257
      %p264 = scmp.eq.s32.totalorder %s37, 1
      %p265 = por %p263, %p264
      %p266 = scmp.ne.s32.totalorder %s257, %s258
      %p267 = scmp.eq.s32.totalorder %s37, 0
      %p268 = por %p266, %p267
      %p269 = scmp.ne.s32.totalorder %s257, %s258
      %p270 = scmp.eq.s32.totalorder %s38, 1
      %p271 = por %p269, %p270
      %p273 = scmp.ne.s32.totalorder %s258, %s272
      %p274 = scmp.eq.s32.totalorder %s38, 0
      %p275 = por %p273, %p274
      %s277 = sadd.s32 %s276, 1
      %p280 = scmp.eq.s32.totalorder %s32, 1
      %p281 = scmp.ne.s32.totalorder %s276, %s278
      %p282 = scmp.eq.s32.totalorder %s32, 0
      %p283 = por %p281, %p282
      %p284 = scmp.ne.s32.totalorder %s276, %s278
      %p285 = scmp.eq.s32.totalorder %s37, 1
      %p286 = por %p284, %p285
      %p287 = scmp.ne.s32.totalorder %s278, %s279
      %p288 = scmp.eq.s32.totalorder %s37, 0
      %p289 = por %p287, %p288
      %p290 = scmp.ne.s32.totalorder %s278, %s279
      %p291 = scmp.eq.s32.totalorder %s38, 1
      %p292 = por %p290, %p291
      %p294 = scmp.ne.s32.totalorder %s279, %s293
      %p295 = scmp.eq.s32.totalorder %s38, 0
      %p296 = por %p294, %p295
      %s298 = sadd.s32 %s297, 1
      %p301 = scmp.eq.s32.totalorder %s32, 1
      %p302 = scmp.ne.s32.totalorder %s297, %s299
      %p303 = scmp.eq.s32.totalorder %s32, 0
      %p304 = por %p302, %p303
      %p305 = scmp.ne.s32.totalorder %s297, %s299
      %p306 = scmp.eq.s32.totalorder %s37, 1
      %p307 = por %p305, %p306
      %p308 = scmp.ne.s32.totalorder %s299, %s300
      %p309 = scmp.eq.s32.totalorder %s37, 0
      %p310 = por %p308, %p309
      %p311 = scmp.ne.s32.totalorder %s299, %s300
      %p312 = scmp.eq.s32.totalorder %s38, 1
      %p313 = por %p311, %p312
      %p315 = scmp.ne.s32.totalorder %s300, %s314
      %p316 = scmp.eq.s32.totalorder %s38, 0
      %p317 = por %p315, %p316
      %s319 = sadd.s32 %s318, 1
      %p322 = scmp.eq.s32.totalorder %s32, 1
      %p323 = scmp.ne.s32.totalorder %s318, %s320
      %p324 = scmp.eq.s32.totalorder %s32, 0
      %p325 = por %p323, %p324
      %p326 = scmp.ne.s32.totalorder %s318, %s320
      %p327 = scmp.eq.s32.totalorder %s37, 1
      %p328 = por %p326, %p327
      %p329 = scmp.ne.s32.totalorder %s320, %s321
      %p330 = scmp.eq.s32.totalorder %s37, 0
      %p331 = por %p329, %p330
      %p332 = scmp.ne.s32.totalorder %s320, %s321
      %p333 = scmp.eq.s32.totalorder %s38, 1
      %p334 = por %p332, %p333
      %p336 = scmp.ne.s32.totalorder %s321, %s335
      %p337 = scmp.eq.s32.totalorder %s38, 0
      %p338 = por %p336, %p337
      %s340 = sadd.s32 %s339, 1
      %p343 = scmp.eq.s32.totalorder %s32, 1
      %p344 = scmp.ne.s32.totalorder %s339, %s341
      %p345 = scmp.eq.s32.totalorder %s32, 0
      %p346 = por %p344, %p345
      %p347 = scmp.ne.s32.totalorder %s339, %s341
      %p348 = scmp.eq.s32.totalorder %s37, 1
      %p349 = por %p347, %p348
      %p350 = scmp.ne.s32.totalorder %s341, %s342
      %p351 = scmp.eq.s32.totalorder %s37, 0
      %p352 = por %p350, %p351
      %p353 = scmp.ne.s32.totalorder %s341, %s342
      %p354 = scmp.eq.s32.totalorder %s38, 1
      %p355 = por %p353, %p354
      %p357 = scmp.ne.s32.totalorder %s342, %s356
      %p358 = scmp.eq.s32.totalorder %s38, 0
      %p359 = por %p357, %p358
      %s361 = sadd.s32 %s360, 1
      %p364 = scmp.eq.s32.totalorder %s32, 1
      %p365 = scmp.ne.s32.totalorder %s360, %s362
      %p366 = scmp.eq.s32.totalorder %s32, 0
      %p367 = por %p365, %p366
      %p368 = scmp.ne.s32.totalorder %s360, %s362
      %p369 = scmp.eq.s32.totalorder %s37, 1
      %p370 = por %p368, %p369
      %p371 = scmp.ne.s32.totalorder %s362, %s363
      %p372 = scmp.eq.s32.totalorder %s37, 0
      %p373 = por %p371, %p372
      %p374 = scmp.ne.s32.totalorder %s362, %s363
      %p375 = scmp.eq.s32.totalorder %s38, 1
      %p376 = por %p374, %p375
      %p378 = scmp.ne.s32.totalorder %s363, %s377
      %p379 = scmp.eq.s32.totalorder %s38, 0
      %p380 = por %p378, %p379
      %s382 = sadd.s32 %s381, 1
      %p385 = scmp.eq.s32.totalorder %s32, 1
      %p386 = scmp.ne.s32.totalorder %s381, %s383
      %p387 = scmp.eq.s32.totalorder %s32, 0
      %p388 = por %p386, %p387
      %p389 = scmp.ne.s32.totalorder %s381, %s383
      %p390 = scmp.eq.s32.totalorder %s37, 1
      %p391 = por %p389, %p390
      %p392 = scmp.ne.s32.totalorder %s383, %s384
      %p393 = scmp.eq.s32.totalorder %s37, 0
      %p394 = por %p392, %p393
      %p395 = scmp.ne.s32.totalorder %s383, %s384
      %p396 = scmp.eq.s32.totalorder %s38, 1
      %p397 = por %p395, %p396
      %p399 = scmp.ne.s32.totalorder %s384, %s398
      %p400 = scmp.eq.s32.totalorder %s38, 0
      %p401 = por %p399, %p400
      %s402 = ssub.s32 %s32, %s39
      %p403 = scmp.eq.s32.totalorder %s402, 0
      %s405 = sadd.s32 %s404, 1
      %s406 = scalar_select %p403, %s404, %s405
      %p409 = pneg %p403
      %p410 = scmp.eq.s32.totalorder %s32, 1
      %p411 = por %p409, %p410
      %p412 = scmp.ne.s32.totalorder %s404, %s407
      %p413 = scmp.eq.s32.totalorder %s32, 0
      %p414 = por %p412, %p413
      %p415 = scmp.ne.s32.totalorder %s404, %s407
      %p416 = scmp.eq.s32.totalorder %s37, 1
      %p417 = por %p415, %p416
      %p418 = scmp.ne.s32.totalorder %s407, %s408
      %p419 = scmp.eq.s32.totalorder %s37, 0
      %p420 = por %p418, %p419
      %p421 = scmp.ne.s32.totalorder %s407, %s408
      %p422 = scmp.eq.s32.totalorder %s38, 1
      %p423 = por %p421, %p422
      %p425 = scmp.ne.s32.totalorder %s408, %s424
      %p426 = scmp.eq.s32.totalorder %s38, 0
      %p427 = por %p425, %p426
      %s428 = ssub.s32 %s32, %s39
      %p429 = scmp.eq.s32.totalorder %s428, 0
      %s431 = sadd.s32 %s430, 1
      %s432 = scalar_select %p429, %s430, %s431
      %p435 = pneg %p429
      %p436 = scmp.eq.s32.totalorder %s32, 1
      %p437 = por %p435, %p436
      %p438 = scmp.ne.s32.totalorder %s430, %s433
      %p439 = scmp.eq.s32.totalorder %s32, 0
      %p440 = por %p438, %p439
      %p441 = scmp.ne.s32.totalorder %s430, %s433
      %p442 = scmp.eq.s32.totalorder %s37, 1
      %p443 = por %p441, %p442
      %p444 = scmp.ne.s32.totalorder %s433, %s434
      %p445 = scmp.eq.s32.totalorder %s37, 0
      %p446 = por %p444, %p445
      %p447 = scmp.ne.s32.totalorder %s433, %s434
      %p448 = scmp.eq.s32.totalorder %s38, 1
      %p449 = por %p447, %p448
      %p451 = scmp.ne.s32.totalorder %s434, %s450
      %p452 = scmp.eq.s32.totalorder %s38, 0
      %p453 = por %p451, %p452
      %s454 = ssub.s32 %s32, %s39
      %p455 = scmp.eq.s32.totalorder %s454, 0
      %s457 = sadd.s32 %s456, 1
      %s458 = scalar_select %p455, %s456, %s457
      %p461 = pneg %p455
      %p462 = scmp.eq.s32.totalorder %s32, 1
      %p463 = por %p461, %p462
      %p464 = scmp.ne.s32.totalorder %s456, %s459
      %p465 = scmp.eq.s32.totalorder %s32, 0
      %p466 = por %p464, %p465
      %p467 = scmp.ne.s32.totalorder %s456, %s459
      %p468 = scmp.eq.s32.totalorder %s37, 1
      %p469 = por %p467, %p468
      %p470 = scmp.ne.s32.totalorder %s459, %s460
      %p471 = scmp.eq.s32.totalorder %s37, 0
      %p472 = por %p470, %p471
      %p473 = scmp.ne.s32.totalorder %s459, %s460
      %p474 = scmp.eq.s32.totalorder %s38, 1
      %p475 = por %p473, %p474
      %p477 = scmp.ne.s32.totalorder %s460, %s476
      %p478 = scmp.eq.s32.totalorder %s38, 0
      %p479 = por %p477, %p478
      %s480 = ssub.s32 %s32, %s39
      %p481 = scmp.eq.s32.totalorder %s480, 0
      %s483 = sadd.s32 %s482, 1
      %s484 = scalar_select %p481, %s482, %s483
      %p487 = pneg %p481
      %p488 = scmp.eq.s32.totalorder %s32, 1
      %p489 = por %p487, %p488
      %p490 = scmp.ne.s32.totalorder %s482, %s485
      %p491 = scmp.eq.s32.totalorder %s32, 0
      %p492 = por %p490, %p491
      %p493 = scmp.ne.s32.totalorder %s482, %s485
      %p494 = scmp.eq.s32.totalorder %s37, 1
      %p495 = por %p493, %p494
      %p496 = scmp.ne.s32.totalorder %s485, %s486
      %p497 = scmp.eq.s32.totalorder %s37, 0
      %p498 = por %p496, %p497
      %p499 = scmp.ne.s32.totalorder %s485, %s486
      %p500 = scmp.eq.s32.totalorder %s38, 1
      %p501 = por %p499, %p500
      %p503 = scmp.ne.s32.totalorder %s486, %s502
      %p504 = scmp.eq.s32.totalorder %s38, 0
      %p505 = por %p503, %p504
      %s506 = ssub.s32 %s32, %s39
      %p507 = scmp.eq.s32.totalorder %s506, 0
      %s509 = sadd.s32 %s508, 1
      %s510 = scalar_select %p507, %s508, %s509
      %p513 = pneg %p507
      %p514 = scmp.eq.s32.totalorder %s32, 1
      %p515 = por %p513, %p514
      %p516 = scmp.ne.s32.totalorder %s508, %s511
      %p517 = scmp.eq.s32.totalorder %s32, 0
      %p518 = por %p516, %p517
      %p519 = scmp.ne.s32.totalorder %s508, %s511
      %p520 = scmp.eq.s32.totalorder %s37, 1
      %p521 = por %p519, %p520
      %p522 = scmp.ne.s32.totalorder %s511, %s512
      %p523 = scmp.eq.s32.totalorder %s37, 0
      %p524 = por %p522, %p523
      %p525 = scmp.ne.s32.totalorder %s511, %s512
      %p526 = scmp.eq.s32.totalorder %s38, 1
      %p527 = por %p525, %p526
      %p529 = scmp.ne.s32.totalorder %s512, %s528
      %p530 = scmp.eq.s32.totalorder %s38, 0
      %p531 = por %p529, %p530
      %s532 = ssub.s32 %s32, %s39
      %p533 = scmp.eq.s32.totalorder %s532, 0
      %s535 = sadd.s32 %s534, 1
      %s536 = scalar_select %p533, %s534, %s535
      %p539 = pneg %p533
      %p540 = scmp.eq.s32.totalorder %s32, 1
      %p541 = por %p539, %p540
      %p542 = scmp.ne.s32.totalorder %s534, %s537
      %p543 = scmp.eq.s32.totalorder %s32, 0
      %p544 = por %p542, %p543
      %p545 = scmp.ne.s32.totalorder %s534, %s537
      %p546 = scmp.eq.s32.totalorder %s37, 1
      %p547 = por %p545, %p546
      %p548 = scmp.ne.s32.totalorder %s537, %s538
      %p549 = scmp.eq.s32.totalorder %s37, 0
      %p550 = por %p548, %p549
      %p551 = scmp.ne.s32.totalorder %s537, %s538
      %p552 = scmp.eq.s32.totalorder %s38, 1
      %p553 = por %p551, %p552
      %p555 = scmp.ne.s32.totalorder %s538, %s554
      %p556 = scmp.eq.s32.totalorder %s38, 0
      %p557 = por %p555, %p556
      %p558 = scmp.le.s32.totalorder 1, %s32
      %p559 = scmp.lt.s32.totalorder %s32, 3
      %p560 = pnand %p558, %p559
      %p561 = pneg %p560
      // Predicated region
      $region9: #{baseline_forward_predict.1} parent=5 // pred_check
        _
      $region10: #{baseline_forward_predict.1} parent=5 // pred_check_branch
        %563 = sbr.rel (%p560) target = $region12
      $region11: #{baseline_forward_predict.1} parent=5 // pred_region
        %s564 = ssub.s32 %s32, 1
        // Predicated region
        $region13: #{baseline_forward_predict.1} parent=11 // pred_check
          %p565 = pneg %p79
        $region14: #{baseline_forward_predict.1} parent=11 // pred_check_branch
          %567 = sbr.rel (%p565) target = $region16
        $region15: #{baseline_forward_predict.1} parent=11 // pred_region
          _
        $region16: #{baseline_forward_predict.1} parent=11 // pred_fallthru
          _
        // Predicated region
        $region17: #{baseline_forward_predict.1} parent=11 // pred_check
          %p568 = pneg %p100
        $region18: #{baseline_forward_predict.1} parent=11 // pred_check_branch
          %570 = sbr.rel (%p568) target = $region20
        $region19: #{baseline_forward_predict.1} parent=11 // pred_region
          _
        $region20: #{baseline_forward_predict.1} parent=11 // pred_fallthru
          _
        // Predicated region
        $region21: #{baseline_forward_predict.1} parent=11 // pred_check
          %p571 = pneg %p121
        $region22: #{baseline_forward_predict.1} parent=11 // pred_check_branch
          %573 = sbr.rel (%p571) target = $region24
        $region23: #{baseline_forward_predict.1} parent=11 // pred_region
          _
        $region24: #{baseline_forward_predict.1} parent=11 // pred_fallthru
          _
        // Predicated region
        $region25: #{baseline_forward_predict.1} parent=11 // pred_check
          %p574 = pneg %p142
        $region26: #{baseline_forward_predict.1} parent=11 // pred_check_branch
          %576 = sbr.rel (%p574) target = $region28
        $region27: #{baseline_forward_predict.1} parent=11 // pred_region
          _
        $region28: #{baseline_forward_predict.1} parent=11 // pred_fallthru
          _
        // Predicated region
        $region29: #{baseline_forward_predict.1} parent=11 // pred_check
          %p577 = pneg %p163
        $region30: #{baseline_forward_predict.1} parent=11 // pred_check_branch
          %579 = sbr.rel (%p577) target = $region32
        $region31: #{baseline_forward_predict.1} parent=11 // pred_region
          _
        $region32: #{baseline_forward_predict.1} parent=11 // pred_fallthru
          _
        // Predicated region
        $region33: #{baseline_forward_predict.1} parent=11 // pred_check
          %p580 = pneg %p184
        $region34: #{baseline_forward_predict.1} parent=11 // pred_check_branch
          %582 = sbr.rel (%p580) target = $region36
        $region35: #{baseline_forward_predict.1} parent=11 // pred_region
          _
        $region36: #{baseline_forward_predict.1} parent=11 // pred_fallthru
          _
        // Predicated region
        $region37: #{baseline_forward_predict.1} parent=11 // pred_check
          %p583 = pneg %p205
        $region38: #{baseline_forward_predict.1} parent=11 // pred_check_branch
          %585 = sbr.rel (%p583) target = $region40
        $region39: #{baseline_forward_predict.1} parent=11 // pred_region
          _
        $region40: #{baseline_forward_predict.1} parent=11 // pred_fallthru
          _
        // Predicated region
        $region41: #{baseline_forward_predict.1} parent=11 // pred_check
          %p586 = pneg %p226
        $region42: #{baseline_forward_predict.1} parent=11 // pred_check_branch
          %588 = sbr.rel (%p586) target = $region44
        $region43: #{baseline_forward_predict.1} parent=11 // pred_region
          _
        $region44: #{baseline_forward_predict.1} parent=11 // pred_fallthru
          _
        // Predicated region
        $region45: #{baseline_forward_predict.1} parent=11 // pred_check
          %p589 = pneg %p247
        $region46: #{baseline_forward_predict.1} parent=11 // pred_check_branch
          %591 = sbr.rel (%p589) target = $region48
        $region47: #{baseline_forward_predict.1} parent=11 // pred_region
          _
        $region48: #{baseline_forward_predict.1} parent=11 // pred_fallthru
          _
        // Predicated region
        $region49: #{baseline_forward_predict.1} parent=11 // pred_check
          %p592 = pneg %p268
        $region50: #{baseline_forward_predict.1} parent=11 // pred_check_branch
          %594 = sbr.rel (%p592) target = $region52
        $region51: #{baseline_forward_predict.1} parent=11 // pred_region
          _
        $region52: #{baseline_forward_predict.1} parent=11 // pred_fallthru
          _
        // Predicated region
        $region53: #{baseline_forward_predict.1} parent=11 // pred_check
          %p595 = pneg %p289
        $region54: #{baseline_forward_predict.1} parent=11 // pred_check_branch
          %597 = sbr.rel (%p595) target = $region56
        $region55: #{baseline_forward_predict.1} parent=11 // pred_region
          _
        $region56: #{baseline_forward_predict.1} parent=11 // pred_fallthru
          _
        // Predicated region
        $region57: #{baseline_forward_predict.1} parent=11 // pred_check
          %p598 = pneg %p310
        $region58: #{baseline_forward_predict.1} parent=11 // pred_check_branch
          %600 = sbr.rel (%p598) target = $region60
        $region59: #{baseline_forward_predict.1} parent=11 // pred_region
          _
        $region60: #{baseline_forward_predict.1} parent=11 // pred_fallthru
          _
        // Predicated region
        $region61: #{baseline_forward_predict.1} parent=11 // pred_check
          %p601 = pneg %p331
        $region62: #{baseline_forward_predict.1} parent=11 // pred_check_branch
          %603 = sbr.rel (%p601) target = $region64
        $region63: #{baseline_forward_predict.1} parent=11 // pred_region
          _
        $region64: #{baseline_forward_predict.1} parent=11 // pred_fallthru
          _
        // Predicated region
        $region65: #{baseline_forward_predict.1} parent=11 // pred_check
          %p604 = pneg %p352
        $region66: #{baseline_forward_predict.1} parent=11 // pred_check_branch
          %606 = sbr.rel (%p604) target = $region68
        $region67: #{baseline_forward_predict.1} parent=11 // pred_region
          _
        $region68: #{baseline_forward_predict.1} parent=11 // pred_fallthru
          _
        // Predicated region
        $region69: #{baseline_forward_predict.1} parent=11 // pred_check
          %p607 = pneg %p373
        $region70: #{baseline_forward_predict.1} parent=11 // pred_check_branch
          %609 = sbr.rel (%p607) target = $region72
        $region71: #{baseline_forward_predict.1} parent=11 // pred_region
          _
        $region72: #{baseline_forward_predict.1} parent=11 // pred_fallthru
          _
        // Predicated region
        $region73: #{baseline_forward_predict.1} parent=11 // pred_check
          %p610 = pneg %p394
        $region74: #{baseline_forward_predict.1} parent=11 // pred_check_branch
          %612 = sbr.rel (%p610) target = $region76
        $region75: #{baseline_forward_predict.1} parent=11 // pred_region
          _
        $region76: #{baseline_forward_predict.1} parent=11 // pred_fallthru
          _
      $region12: #{baseline_forward_predict.1} parent=5 // pred_fallthru
        _
      %p613 = scmp.lt.s32.totalorder %s32, 2
      // Predicated region
      $region77: #{baseline_forward_predict.1} parent=5 // pred_check
        %p614 = pneg %p613
      $region78: #{baseline_forward_predict.1} parent=5 // pred_check_branch
        %616 = sbr.rel (%p614) target = $region80
      $region79: #{baseline_forward_predict.1} parent=5 // pred_region
        // Predicated region
        $region81: #{baseline_forward_predict.1} parent=79 // pred_check
          %p617 = pneg %p52
        $region82: #{baseline_forward_predict.1} parent=79 // pred_check_branch
          %619 = sbr.rel (%p617) target = $region84
        $region83: #{baseline_forward_predict.1} parent=79 // pred_region
          %p620 = scmp.lt.s32.totalorder %s32, 1
          %s621 = scalar_select %p620, %s32, 1
          %s622 = smul.addr %s621, 2
          %s623 = smul.addr %s622, 8
          %s624 = scalar_lea.vmem %s0, %s623
        $region84: #{baseline_forward_predict.1} parent=79 // pred_fallthru
          _
      $region80: #{baseline_forward_predict.1} parent=5 // pred_fallthru
        _
      %p625 = scmp.le.s32.totalorder 1, %s32
      %p626 = scmp.lt.s32.totalorder %s32, 3
      %p627 = pnand %p625, %p626
      %p628 = pneg %p627
      // Predicated region
      $region85: #{baseline_forward_predict.1} parent=5 // pred_check
        _
      $region86: #{baseline_forward_predict.1} parent=5 // pred_check_branch
        %630 = sbr.rel (%p627) target = $region88
      $region87: #{baseline_forward_predict.1} parent=5 // pred_region
        %s631 = ssub.s32 %s32, 1
        %p632 = scmp.lt.s32.totalorder %s37, 1
        %s633 = scalar_select %p632, %s37, 1
        %s634 = smul.addr %s633, 2
        %s635 = smul.addr %s634, 8
        %s636 = scalar_lea.vmem %s0, %s635
        %p637 = pneg %p58
        %p638 = pneg %p55
        %p639 = pneg %p79
        %p640 = pneg %p76
        %p641 = pneg %p100
        %p642 = pneg %p97
        %p643 = pneg %p121
        %p644 = pneg %p118
        %p645 = pneg %p142
        %p646 = pneg %p139
        %p647 = pneg %p163
        %p648 = pneg %p160
        %p649 = pneg %p184
        %p650 = pneg %p181
        %p651 = pneg %p205
        %p652 = pneg %p202
        %p653 = pneg %p226
        %p654 = pneg %p223
        %p655 = pneg %p247
        %p656 = pneg %p244
        %p657 = pneg %p268
        %p658 = pneg %p265
        %p659 = pneg %p289
        %p660 = pneg %p286
        %p661 = pneg %p310
        %p662 = pneg %p307
        %p663 = pneg %p331
        %p664 = pneg %p328
        %p665 = pneg %p352
        %p666 = pneg %p349
        %p667 = pneg %p373
        %p668 = pneg %p370
        %p669 = pneg %p394
        %p670 = pneg %p391
        %p671 = pneg %p420
        %p672 = pneg %p417
        %p673 = scmp.lt.s32.totalorder %s37, 1
        %s674 = scalar_select %p673, %s37, 1
        %s675 = smul.addr %s674, 2
        %s676 = smul.addr %s675, 8
        %s677 = scalar_lea.vmem %s17, %s676
        %p678 = pneg %p446
        %p679 = pneg %p443
        %p680 = scmp.lt.s32.totalorder %s37, 1
        %s681 = scalar_select %p680, %s37, 1
        %s682 = smul.addr %s681, 2
        %s683 = smul.addr %s682, 8
        %s684 = scalar_lea.vmem %s18, %s683
        %p685 = pneg %p472
        %p686 = pneg %p469
        %s687 = sand.u32 %s459, 1
        %s688 = scalar_lea.sflag [#allocation3], %s687
        %s689 = sand.u32 %s459, 1
        %s690 = smul.addr %s689, 16
        %s691 = scalar_lea.vmem [#allocation2], %s690
        %p692 = pneg %p498
        %p693 = pneg %p495
        %p694 = scmp.lt.s32.totalorder %s37, 1
        %s695 = scalar_select %p694, %s37, 1
        %s696 = smul.addr %s695, 2
        %s697 = smul.addr %s696, 8
        %s698 = scalar_lea.vmem %s20, %s697
        %p699 = pneg %p524
        %p700 = pneg %p521
        %p701 = scmp.lt.s32.totalorder %s37, 1
        %s702 = scalar_select %p701, %s37, 1
        %s703 = smul.addr %s702, 2
        %s704 = smul.addr %s703, 8
        %s705 = scalar_lea.vmem %s21, %s704
        %p706 = pneg %p550
        %p707 = pneg %p547
        %p708 = scmp.lt.s32.totalorder %s37, 1
        %s709 = scalar_select %p708, %s37, 1
        %s710 = smul.addr %s709, 2
        %s711 = smul.addr %s710, 8
        %s712 = scalar_lea.vmem %s22, %s711
        %p713 = scmp.lt.s32.totalorder %s37, 1
        %s714 = scalar_select %p713, %s37, 1
        %s715 = smul.addr %s714, 2
        %s716 = smul.addr %s715, 8
        %s717 = scalar_lea.vmem %s0, %s716
        %p718 = scmp.lt.s32.totalorder %s37, 1
        %s719 = scalar_select %p718, %s37, 1
        %s720 = smul.addr %s719, 2
        %s721 = smul.addr %s720, 8
        %s722 = scalar_lea.vmem %s17, %s721
        %p723 = scmp.lt.s32.totalorder %s37, 1
        %s724 = scalar_select %p723, %s37, 1
        %s725 = smul.addr %s724, 2
        %s726 = smul.addr %s725, 8
        %s727 = scalar_lea.vmem %s18, %s726
        %p728 = scmp.lt.s32.totalorder %s37, 1
        %s729 = scalar_select %p728, %s37, 1
        %s730 = smul.addr %s729, 2
        %s731 = smul.addr %s730, 8
        %s732 = scalar_lea.vmem %s20, %s731
        %p733 = scmp.lt.s32.totalorder %s37, 1
        %s734 = scalar_select %p733, %s37, 1
        %s735 = smul.addr %s734, 2
        %s736 = smul.addr %s735, 8
        %s737 = scalar_lea.vmem %s21, %s736
        %p738 = scmp.lt.s32.totalorder %s37, 1
        %s739 = scalar_select %p738, %s37, 1
        %s740 = smul.addr %s739, 2
        %s741 = smul.addr %s740, 8
        %s742 = scalar_lea.vmem %s22, %s741
        %v743 = vld [vmem:[%s717] sm:$0xff]
        %v744 = vld [vmem:[%s717 + $0x8] sm:$0xff]
        %v745 = vld [vmem:[%s1] sm:$0xff]
        %v746 = vld [vmem:[%s1 + $0x8] sm:$0xff]
        %v747 = vld [vmem:[%s1 + $0x10] sm:$0xff]
        %v748 = vld [vmem:[%s1 + $0x18] sm:$0xff]
        %v749 = vld [vmem:[%s2] sm:$0x1]
        %v751 = vlaneseq
        %v752 = vshrl.u32 %v751, 7
        %v753 = vsub.s32 0, %v752
        %v754 = vrot.slane %v749, %v753
        %vm756 = vcmask 261120
        %v758 = vsel %vm756, %v743, 0
        %v761 = vsel %vm756, %v744, 0
        %763 = vmatprep.subr.mxu0 0.0
        %764 = vmatpush1.msra.mxu0 %v745
        %765 = vmatprep.subr.mxu0 0.0
        %766 = vmatpush1.msra.mxu0 %v746
        %767 = vmatprep.subr.mxu0 0.0
        %768 = vmatpush1.msra.mxu0 %v747
        %769 = vmatprep.subr.mxu0 0.0
        %770 = vmatpush1.msra.mxu0 %v748
        %771 = vmatprep.subr.mxu0 0.0
        %772 = vmatpush1.msra.mxu0 0.0
        %773 = vmatprep.subr.mxu0 0.0
        %774 = vmatpush1.msra.mxu0 0.0
        %775 = vmatprep.subr.mxu0 0.0
        %776 = vmatpush1.msra.mxu0 0.0
        %777 = vmatprep.subr.mxu0 0.0
        %778 = vmatpush1.msra.mxu0 0.0
        %779 = vmatprep.subr.mxu0 0.0
        %780 = vmatpush1.msra.mxu0 0.0
        %781 = vmatprep.subr.mxu0 0.0
        %782 = vmatpush1.msra.mxu0 0.0
        %783 = vmatprep.subr.mxu0 0.0
        %784 = vmatpush1.msra.mxu0 0.0
        %785 = vmatprep.subr.mxu0 0.0
        %786 = vmatpush1.msra.mxu0 0.0
        %787 = vmatprep.subr.mxu0 0.0
        %788 = vmatpush1.msra.mxu0 0.0
        %789 = vmatprep.subr.mxu0 0.0
        %790 = vmatpush1.msra.mxu0 0.0
        %791 = vmatprep.subr.mxu0 0.0
        %792 = vmatpush1.msra.mxu0 0.0
        %793 = vmatprep.subr.mxu0 0.0
        %794 = vmatpush1.msra.mxu0 0.0
        %795 = vmatprep.subr.mxu0 0.0
        %796 = vmatpush1.msra.mxu0 0.0
        %797 = vmatprep.subr.mxu0 0.0
        %798 = vmatpush1.msra.mxu0 0.0
        %799 = vmatprep.subr.mxu0 0.0
        %800 = vmatpush1.msra.mxu0 0.0
        %801 = vmatprep.subr.mxu0 0.0
        %802 = vmatpush1.msra.mxu0 0.0
        %803 = vmatprep.subr.mxu0 0.0
        %804 = vmatpush1.msra.mxu0 0.0
        %805 = vmatprep.subr.mxu0 0.0
        %806 = vmatpush1.msra.mxu0 0.0
        %807 = vmatprep.subr.mxu0 0.0
        %808 = vmatpush1.msra.mxu0 0.0
        %809 = vmatprep.subr.mxu0 0.0
        %810 = vmatpush1.msra.mxu0 0.0
        %811 = vmatprep.subr.mxu0 0.0
        %812 = vmatpush1.msra.mxu0 0.0
        %813 = vmatprep.subr.mxu0 0.0
        %814 = vmatpush1.msra.mxu0 0.0
        %815 = vmatprep.subr.mxu0 0.0
        %816 = vmatpush1.msra.mxu0 0.0
        %817 = vmatprep.subr.mxu0 0.0
        %818 = vmatpush1.msra.mxu0 0.0
        %819 = vmatprep.subr.mxu0 0.0
        %820 = vmatpush1.msra.mxu0 0.0
        %821 = vmatprep.subr.mxu0 0.0
        %822 = vmatpush1.msra.mxu0 0.0
        %823 = vmatprep.subr.mxu0 0.0
        %824 = vmatpush1.msra.mxu0 0.0
        %825 = vmatprep.subr.mxu0 0.0
        %826 = vmatpush1.msra.mxu0 0.0
        %827 = vmatprep.mubr.f32.mxu0 0.0
        %828 = vmatmul.mubr.f32.gmra.mrb[0].mxu0 %v758
        %v829 = vpop.f32.mrb[0].mxu0
        %v830 = vadd.f32 %v754, %v829
        %v831 = vpop.f32.mrb[0].mxu0
        %832 = vmatprep.mubr.f32.mxu0 0.0
        %833 = vmatmul.mubr.f32.gmra.mrb[0].mxu0 %v761
        %v834 = vpop.f32.mrb[0].mxu0
        %v835 = vadd.f32 %v754, %v834
        %v836 = vpop.f32.mrb[0].mxu0
        %837 = vdwg.mxu0
        %v838 = vtanh.pop %v830
        %v839 = vtanh.pop %v835
        %v840 = vlaneseq
        %v841 = vshrl.u32 %v840, 7
        %v842 = vadd.s32 %v841, 8
        %vm843 = vcmp.eq.s32.totalorder %v841, 0
        %vm844 = vcmp.eq.s32.totalorder %v842, 0
        %v845 = vld [vmem:[%s3] sm:$0x1]
        %v847 = vlaneseq
        %v848 = vshrl.u32 %v847, 7
        %v849 = vsub.s32 0, %v848
        %v850 = vrot.slane %v845, %v849
        %v852 = vsel %vm843, %v850, %v838
        %v853 = vsel %vm844, %v850, %v839
        %v854 = vld [vmem:[%s4] sm:$0xff]
        %v855 = vld [vmem:[%s4 + $0x8] sm:$0xff]
        %v856 = vld [vmem:[%s4 + $0x10] sm:$0xff]
        %v857 = vld [vmem:[%s4 + $0x18] sm:$0xff]
        %v858 = vld [vmem:[%s4 + $0x20] sm:$0xff]
        %v859 = vld [vmem:[%s4 + $0x28] sm:$0xff]
        %v860 = vld [vmem:[%s4 + $0x30] sm:$0xff]
        %v861 = vld [vmem:[%s4 + $0x38] sm:$0xff]
        %v862 = vld [vmem:[%s5] sm:$0x3]
        %v864 = vlaneseq
        %v865 = vshrl.u32 %v864, 7
        %v866 = vsub.s32 0, %v865
        %v867 = vrot.slane %v862, %v866
        %v868 = vlaneseq
        %v869 = vshrl.u32 %v868, 7
        %v870 = vsub.s32 1, %v869
        %v871 = vrot.slane %v862, %v870
        %v875 = vsel %vm756, %v852, 0
        %v878 = vsel %vm756, %v853, 0
        %880 = vmatprep.subr.mxu0 %v855
        %881 = vmatpush1.msra.mxu0 %v854
        %882 = vmatprep.subr.mxu0 %v857
        %883 = vmatpush1.msra.mxu0 %v856
        %884 = vmatprep.subr.mxu0 %v859
        %885 = vmatpush1.msra.mxu0 %v858
        %886 = vmatprep.subr.mxu0 %v861
        %887 = vmatpush1.msra.mxu0 %v860
        %888 = vmatprep.subr.mxu0 0.0
        %889 = vmatpush1.msra.mxu0 0.0
        %890 = vmatprep.subr.mxu0 0.0
        %891 = vmatpush1.msra.mxu0 0.0
        %892 = vmatprep.subr.mxu0 0.0
        %893 = vmatpush1.msra.mxu0 0.0
        %894 = vmatprep.subr.mxu0 0.0
        %895 = vmatpush1.msra.mxu0 0.0
        %896 = vmatprep.subr.mxu0 0.0
        %897 = vmatpush1.msra.mxu0 0.0
        %898 = vmatprep.subr.mxu0 0.0
        %899 = vmatpush1.msra.mxu0 0.0
        %900 = vmatprep.subr.mxu0 0.0
        %901 = vmatpush1.msra.mxu0 0.0
        %902 = vmatprep.subr.mxu0 0.0
        %903 = vmatpush1.msra.mxu0 0.0
        %904 = vmatprep.subr.mxu0 0.0
        %905 = vmatpush1.msra.mxu0 0.0
        %906 = vmatprep.subr.mxu0 0.0
        %907 = vmatpush1.msra.mxu0 0.0
        %908 = vmatprep.subr.mxu0 0.0
        %909 = vmatpush1.msra.mxu0 0.0
        %910 = vmatprep.subr.mxu0 0.0
        %911 = vmatpush1.msra.mxu0 0.0
        %912 = vmatprep.subr.mxu0 0.0
        %913 = vmatpush1.msra.mxu0 0.0
        %914 = vmatprep.subr.mxu0 0.0
        %915 = vmatpush1.msra.mxu0 0.0
        %916 = vmatprep.subr.mxu0 0.0
        %917 = vmatpush1.msra.mxu0 0.0
        %918 = vmatprep.subr.mxu0 0.0
        %919 = vmatpush1.msra.mxu0 0.0
        %920 = vmatprep.subr.mxu0 0.0
        %921 = vmatpush1.msra.mxu0 0.0
        %922 = vmatprep.subr.mxu0 0.0
        %923 = vmatpush1.msra.mxu0 0.0
        %924 = vmatprep.subr.mxu0 0.0
        %925 = vmatpush1.msra.mxu0 0.0
        %926 = vmatprep.subr.mxu0 0.0
        %927 = vmatpush1.msra.mxu0 0.0
        %928 = vmatprep.subr.mxu0 0.0
        %929 = vmatpush1.msra.mxu0 0.0
        %930 = vmatprep.subr.mxu0 0.0
        %931 = vmatpush1.msra.mxu0 0.0
        %932 = vmatprep.subr.mxu0 0.0
        %933 = vmatpush1.msra.mxu0 0.0
        %934 = vmatprep.subr.mxu0 0.0
        %935 = vmatpush1.msra.mxu0 0.0
        %936 = vmatprep.subr.mxu0 0.0
        %937 = vmatpush1.msra.mxu0 0.0
        %938 = vmatprep.subr.mxu0 0.0
        %939 = vmatpush1.msra.mxu0 0.0
        %940 = vmatprep.subr.mxu0 0.0
        %941 = vmatpush1.msra.mxu0 0.0
        %942 = vmatprep.subr.mxu0 0.0
        %943 = vmatpush1.msra.mxu0 0.0
        %944 = vmatprep.mubr.f32.mxu0 0.0
        %945 = vmatmul.mubr.f32.gmra.mrb[0].mxu0 %v875
        %v946 = vpop.f32.mrb[0].mxu0
        %v947 = vadd.f32 %v867, %v946
        %v948 = vpop.f32.mrb[0].mxu0
        %v949 = vadd.f32 %v871, %v948
        %950 = vmatprep.mubr.f32.mxu0 0.0
        %951 = vmatmul.mubr.f32.gmra.mrb[0].mxu0 %v878
        %v952 = vpop.f32.mrb[0].mxu0
        %v953 = vadd.f32 %v867, %v952
        %v954 = vpop.f32.mrb[0].mxu0
        %v955 = vadd.f32 %v871, %v954
        %956 = vdwg.mxu0
        %v957 = vtanh.pop %v947
        %v958 = vtanh.pop %v949
        %v959 = vtanh.pop %v953
        %v960 = vtanh.pop %v955
        %v961 = vld [vmem:[%s6] sm:$0xff]
        %v962 = vld [vmem:[%s6 + $0x8] sm:$0xff]
        %v963 = vld [vmem:[%s6 + $0x10] sm:$0xff]
        %v964 = vld [vmem:[%s6 + $0x18] sm:$0xff]
        %v966 = vsel %vm756, %v957, 0
        %v969 = vsel %vm756, %v959, 0
        %971 = vmatprep.subr.mxu0 0.0
        %972 = vmatpush1.msra.mxu0 %v961
        %973 = vmatprep.subr.mxu0 0.0
        %974 = vmatpush1.msra.mxu0 %v962
        %975 = vmatprep.subr.mxu0 0.0
        %976 = vmatpush1.msra.mxu0 %v963
        %977 = vmatprep.subr.mxu0 0.0
        %978 = vmatpush1.msra.mxu0 %v964
        %979 = vmatprep.subr.mxu0 0.0
        %980 = vmatpush1.msra.mxu0 0.0
        %981 = vmatprep.subr.mxu0 0.0
        %982 = vmatpush1.msra.mxu0 0.0
        %983 = vmatprep.subr.mxu0 0.0
        %984 = vmatpush1.msra.mxu0 0.0
        %985 = vmatprep.subr.mxu0 0.0
        %986 = vmatpush1.msra.mxu0 0.0
        %987 = vmatprep.subr.mxu0 0.0
        %988 = vmatpush1.msra.mxu0 0.0
        %989 = vmatprep.subr.mxu0 0.0
        %990 = vmatpush1.msra.mxu0 0.0
        %991 = vmatprep.subr.mxu0 0.0
        %992 = vmatpush1.msra.mxu0 0.0
        %993 = vmatprep.subr.mxu0 0.0
        %994 = vmatpush1.msra.mxu0 0.0
        %995 = vmatprep.subr.mxu0 0.0
        %996 = vmatpush1.msra.mxu0 0.0
        %997 = vmatprep.subr.mxu0 0.0
        %998 = vmatpush1.msra.mxu0 0.0
        %999 = vmatprep.subr.mxu0 0.0
        %1000 = vmatpush1.msra.mxu0 0.0
        %1001 = vmatprep.subr.mxu0 0.0
        %1002 = vmatpush1.msra.mxu0 0.0
        %1003 = vmatprep.subr.mxu0 0.0
        %1004 = vmatpush1.msra.mxu0 0.0
        %1005 = vmatprep.subr.mxu0 0.0
        %1006 = vmatpush1.msra.mxu0 0.0
        %1007 = vmatprep.subr.mxu0 0.0
        %1008 = vmatpush1.msra.mxu0 0.0
        %1009 = vmatprep.subr.mxu0 0.0
        %1010 = vmatpush1.msra.mxu0 0.0
        %1011 = vmatprep.subr.mxu0 0.0
        %1012 = vmatpush1.msra.mxu0 0.0
        %1013 = vmatprep.subr.mxu0 0.0
        %1014 = vmatpush1.msra.mxu0 0.0
        %1015 = vmatprep.subr.mxu0 0.0
        %1016 = vmatpush1.msra.mxu0 0.0
        %1017 = vmatprep.subr.mxu0 0.0
        %1018 = vmatpush1.msra.mxu0 0.0
        %1019 = vmatprep.subr.mxu0 0.0
        %1020 = vmatpush1.msra.mxu0 0.0
        %1021 = vmatprep.subr.mxu0 0.0
        %1022 = vmatpush1.msra.mxu0 0.0
        %1023 = vmatprep.subr.mxu0 0.0
        %1024 = vmatpush1.msra.mxu0 0.0
        %1025 = vmatprep.subr.mxu0 0.0
        %1026 = vmatpush1.msra.mxu0 0.0
        %1027 = vmatprep.subr.mxu0 0.0
        %1028 = vmatpush1.msra.mxu0 0.0
        %1029 = vmatprep.subr.mxu0 0.0
        %1030 = vmatpush1.msra.mxu0 0.0
        %1031 = vmatprep.subr.mxu0 0.0
        %1032 = vmatpush1.msra.mxu0 0.0
        %1033 = vmatprep.subr.mxu0 0.0
        %1034 = vmatpush1.msra.mxu0 0.0
        %1035 = vmatprep.mubr.f32.mxu0 0.0
        %1036 = vmatmul.mubr.f32.gmra.mrb[0].mxu0 %v966
        %v1037 = vpop.f32.mrb[0].mxu0
        %v1038 = vadd.f32 0.0, %v1037
        %v1039 = vpop.f32.mrb[0].mxu0
        %1040 = vmatprep.mubr.f32.mxu0 0.0
        %1041 = vmatmul.mubr.f32.gmra.mrb[0].mxu0 %v969
        %v1042 = vpop.f32.mrb[0].mxu0
        %v1043 = vadd.f32 0.0, %v1042
        %v1044 = vpop.f32.mrb[0].mxu0
        %1045 = vdwg.mxu0
        %1046 = vrot.lane.b32.xlu0 %v957, 96
        %v1047 = vpop.permute.xlu0 %1046
        %1048 = vrot.lane.b32.xlu0 %v959, 96
        %v1049 = vpop.permute.xlu0 %1048
        %v1051 = vsel %vm756, %v1038, 0
        %v1054 = vsel %vm756, %v1043, 0
        %v1056 = vsel %vm756, %v1047, 0
        %v1058 = vsel %vm756, %v1049, 0
        %1060 = vmatprep.subr.mxu0 0.0
        %1061 = vmatpush1.xpose.msra.mxu0 %v1056
        %1062 = vmatprep.subr.mxu0 0.0
        %1063 = vmatpush1.xpose.msra.mxu0 %v1058
        %1064 = vmatprep.subr.mxu0 0.0
        %1065 = vmatpush1.xpose.msra.mxu0 0.0
        %1066 = vmatprep.subr.mxu0 0.0
        %1067 = vmatpush1.xpose.msra.mxu0 0.0
        %1068 = vmatprep.subr.mxu0 0.0
        %1069 = vmatpush1.xpose.msra.mxu0 0.0
        %1070 = vmatprep.subr.mxu0 0.0
        %1071 = vmatpush1.xpose.msra.mxu0 0.0
        %1072 = vmatprep.subr.mxu0 0.0
        %1073 = vmatpush1.xpose.msra.mxu0 0.0
        %1074 = vmatprep.subr.mxu0 0.0
        %1075 = vmatpush1.xpose.msra.mxu0 0.0
        %1076 = vmatprep.subr.mxu0 0.0
        %1077 = vmatpush1.xpose.msra.mxu0 0.0
        %1078 = vmatprep.subr.mxu0 0.0
        %1079 = vmatpush1.xpose.msra.mxu0 0.0
        %1080 = vmatprep.subr.mxu0 0.0
        %1081 = vmatpush1.xpose.msra.mxu0 0.0
        %1082 = vmatprep.subr.mxu0 0.0
        %1083 = vmatpush1.xpose.msra.mxu0 0.0
        %1084 = vmatprep.subr.mxu0 0.0
        %1085 = vmatpush1.xpose.msra.mxu0 0.0
        %1086 = vmatprep.subr.mxu0 0.0
        %1087 = vmatpush1.xpose.msra.mxu0 0.0
        %1088 = vmatprep.subr.mxu0 0.0
        %1089 = vmatpush1.xpose.msra.mxu0 0.0
        %1090 = vmatprep.subr.mxu0 0.0
        %1091 = vmatpush1.xpose.msra.mxu0 0.0
        %1092 = vmatprep.subr.mxu0 0.0
        %1093 = vmatpush1.xpose.msra.mxu0 0.0
        %1094 = vmatprep.subr.mxu0 0.0
        %1095 = vmatpush1.xpose.msra.mxu0 0.0
        %1096 = vmatprep.subr.mxu0 0.0
        %1097 = vmatpush1.xpose.msra.mxu0 0.0
        %1098 = vmatprep.subr.mxu0 0.0
        %1099 = vmatpush1.xpose.msra.mxu0 0.0
        %1100 = vmatprep.subr.mxu0 0.0
        %1101 = vmatpush1.xpose.msra.mxu0 0.0
        %1102 = vmatprep.subr.mxu0 0.0
        %1103 = vmatpush1.xpose.msra.mxu0 0.0
        %1104 = vmatprep.subr.mxu0 0.0
        %1105 = vmatpush1.xpose.msra.mxu0 0.0
        %1106 = vmatprep.subr.mxu0 0.0
        %1107 = vmatpush1.xpose.msra.mxu0 0.0
        %1108 = vmatprep.subr.mxu0 0.0
        %1109 = vmatpush1.xpose.msra.mxu0 0.0
        %1110 = vmatprep.subr.mxu0 0.0
        %1111 = vmatpush1.xpose.msra.mxu0 0.0
        %1112 = vmatprep.subr.mxu0 0.0
        %1113 = vmatpush1.xpose.msra.mxu0 0.0
        %1114 = vmatprep.subr.mxu0 0.0
        %1115 = vmatpush1.xpose.msra.mxu0 0.0
        %1116 = vmatprep.subr.mxu0 0.0
        %1117 = vmatpush1.xpose.msra.mxu0 0.0
        %1118 = vmatprep.subr.mxu0 0.0
        %1119 = vmatpush1.xpose.msra.mxu0 0.0
        %1120 = vmatprep.subr.mxu0 0.0
        %1121 = vmatpush1.xpose.msra.mxu0 0.0
        %1122 = vmatprep.subr.mxu0 0.0
        %1123 = vmatpush1.xpose.msra.mxu0 0.0
        %1124 = vmatprep.mubr.f32.mxu0 0.0
        %1125 = vmatmul.mubr.f32.gmra.mrb[0].mxu0 %v1051
        %v1126 = vpop.f32.mrb[0].mxu0
        %v1127 = vadd.f32 0.0, %v1126
        %v1128 = vpop.f32.mrb[0].mxu0
        %1129 = vmatprep.mubr.f32.mxu0 0.0
        %1130 = vmatmul.mubr.f32.gmra.mrb[0].mxu0 %v1054
        %v1131 = vpop.f32.mrb[0].mxu0
        %v1132 = vadd.f32 0.0, %v1131
        %v1133 = vpop.f32.mrb[0].mxu0
        %1134 = vdwg.mxu0
        %v1135 = vlaneseq
        %v1136 = vand.u32 %v1135, 127
        %vm1137 = vcmp.lt.s32.totalorder %v1136, 9
        %v1138 = vsel %vm1137, %v1127, -1e+30
        %v1139 = vsel %vm1137, %v1132, -1e+30
        %vm1140 = vcmask 130048
        %v1141 = vsel %vm1140, %v1138, -inf
        %1142 = vmax.xlane.f32.xlu0 %v1141
        %v1143 = vpop.xlane.xlu0 %1142
        %v1144 = vsel %vm1140, %v1139, -inf
        %1145 = vmax.xlane.f32.xlu0 %v1144
        %v1146 = vpop.xlane.xlu0 %1145
        %vm1147 = vcmp.eq.f32.partialorder %v1138, %v1143
        %vm1148 = vcmp.eq.f32.partialorder %v1139, %v1146
        %v1149 = vsel %vm1147, %v1136, 16
        %v1150 = vsel %vm1148, %v1136, 16
        %v1151 = vsel %vm1140, %v1149, 2147483647
        %v1152 = vand.u32 %v1151, 65535
        %v1153 = vshra.s32 %v1151, 16
        %v1154 = vcvt.s32.f32 %v1152
        %v1155 = vcvt.s32.f32 %v1153
        %1156 = vmin.xlane.f32.xlu0 %v1155
        %v1157 = vpop.xlane.xlu0 %1156
        %vm1158 = vcmp.eq.f32.partialorder %v1155, %v1157
        %v1159 = vsel %vm1158, %v1154, inf
        %1160 = vmin.xlane.f32.xlu0 %v1159
        %v1161 = vpop.xlane.xlu0 %1160
        %v1162 = vcvt.f32.s32 %v1161
        %v1163 = vcvt.f32.s32 %v1157
        %v1164 = vshll.u32 %v1163, 16
        %v1165 = vadd.s32 %v1164, %v1162
        %v1166 = vsel %vm1140, %v1150, 2147483647
        %v1167 = vand.u32 %v1166, 65535
        %v1168 = vshra.s32 %v1166, 16
        %v1169 = vcvt.s32.f32 %v1167
        %v1170 = vcvt.s32.f32 %v1168
        %1171 = vmin.xlane.f32.xlu0 %v1170
        %v1172 = vpop.xlane.xlu0 %1171
        %vm1173 = vcmp.eq.f32.partialorder %v1170, %v1172
        %v1174 = vsel %vm1173, %v1169, inf
        %1175 = vmin.xlane.f32.xlu0 %v1174
        %v1176 = vpop.xlane.xlu0 %1175
        %v1177 = vcvt.f32.s32 %v1176
        %v1178 = vcvt.f32.s32 %v1172
        %v1179 = vshll.u32 %v1178, 16
        %v1180 = vadd.s32 %v1179, %v1177
        %v1181 = vsel %vm843, 0, %v1165
        %v1182 = vsel %vm844, 0, %v1180
        %vm1183 = vcmp.eq.s32.totalorder %v1136, %v1181
        %vm1184 = vcmp.eq.s32.totalorder %v1136, %v1182
        %v1185 = vsel %vm1183, 1, 0
        %v1186 = vsel %vm1184, 1, 0
        %v1187 = vcvt.s32.f32 %v1185
        %v1188 = vcvt.s32.f32 %v1186
        %v1190 = vsel %vm1140, %v1187, 0
        %v1193 = vsel %vm1140, %v1188, 0
        %1195 = vmatprep.subr.mxu0 0.0
        %1196 = vmatpush1.xpose.msra.mxu0 %v1190
        %1197 = vmatprep.subr.mxu0 0.0
        %1198 = vmatpush1.xpose.msra.mxu0 %v1193
        %1199 = vmatprep.subr.mxu0 0.0
        %1200 = vmatpush1.xpose.msra.mxu0 0.0
        %1201 = vmatprep.subr.mxu0 0.0
        %1202 = vmatpush1.xpose.msra.mxu0 0.0
        %1203 = vmatprep.subr.mxu0 0.0
        %1204 = vmatpush1.xpose.msra.mxu0 0.0
        %1205 = vmatprep.subr.mxu0 0.0
        %1206 = vmatpush1.xpose.msra.mxu0 0.0
        %1207 = vmatprep.subr.mxu0 0.0
        %1208 = vmatpush1.xpose.msra.mxu0 0.0
        %1209 = vmatprep.subr.mxu0 0.0
        %1210 = vmatpush1.xpose.msra.mxu0 0.0
        %1211 = vmatprep.subr.mxu0 0.0
        %1212 = vmatpush1.xpose.msra.mxu0 0.0
        %1213 = vmatprep.subr.mxu0 0.0
        %1214 = vmatpush1.xpose.msra.mxu0 0.0
        %1215 = vmatprep.subr.mxu0 0.0
        %1216 = vmatpush1.xpose.msra.mxu0 0.0
        %1217 = vmatprep.subr.mxu0 0.0
        %1218 = vmatpush1.xpose.msra.mxu0 0.0
        %1219 = vmatprep.subr.mxu0 0.0
        %1220 = vmatpush1.xpose.msra.mxu0 0.0
        %1221 = vmatprep.subr.mxu0 0.0
        %1222 = vmatpush1.xpose.msra.mxu0 0.0
        %1223 = vmatprep.subr.mxu0 0.0
        %1224 = vmatpush1.xpose.msra.mxu0 0.0
        %1225 = vmatprep.subr.mxu0 0.0
        %1226 = vmatpush1.xpose.msra.mxu0 0.0
        %1227 = vmatprep.subr.mxu0 0.0
        %1228 = vmatpush1.xpose.msra.mxu0 0.0
        %1229 = vmatprep.subr.mxu0 0.0
        %1230 = vmatpush1.xpose.msra.mxu0 0.0
        %1231 = vmatprep.subr.mxu0 0.0
        %1232 = vmatpush1.xpose.msra.mxu0 0.0
        %1233 = vmatprep.subr.mxu0 0.0
        %1234 = vmatpush1.xpose.msra.mxu0 0.0
        %1235 = vmatprep.subr.mxu0 0.0
        %1236 = vmatpush1.xpose.msra.mxu0 0.0
        %1237 = vmatprep.subr.mxu0 0.0
        %1238 = vmatpush1.xpose.msra.mxu0 0.0
        %1239 = vmatprep.subr.mxu0 0.0
        %1240 = vmatpush1.xpose.msra.mxu0 0.0
        %1241 = vmatprep.subr.mxu0 0.0
        %1242 = vmatpush1.xpose.msra.mxu0 0.0
        %1243 = vmatprep.subr.mxu0 0.0
        %1244 = vmatpush1.xpose.msra.mxu0 0.0
        %1245 = vmatprep.subr.mxu0 0.0
        %1246 = vmatpush1.xpose.msra.mxu0 0.0
        %1247 = vmatprep.subr.mxu0 0.0
        %1248 = vmatpush1.xpose.msra.mxu0 0.0
        %1249 = vmatprep.subr.mxu0 0.0
        %1250 = vmatpush1.xpose.msra.mxu0 0.0
        %1251 = vmatprep.subr.mxu0 0.0
        %1252 = vmatpush1.xpose.msra.mxu0 0.0
        %1253 = vmatprep.subr.mxu0 0.0
        %1254 = vmatpush1.xpose.msra.mxu0 0.0
        %1255 = vmatprep.subr.mxu0 0.0
        %1256 = vmatpush1.xpose.msra.mxu0 0.0
        %1257 = vmatprep.subr.mxu0 0.0
        %1258 = vmatpush1.xpose.msra.mxu0 0.0
        %1259 = vmatprep.mubr.f32.mxu0 0.0
        %1260 = vmatmul.mubr.f32.gmra.mrb[0].mxu0 %v1190
        %v1261 = vpop.f32.mrb[0].mxu0
        %v1262 = vadd.f32 0.0, %v1261
        %v1263 = vpop.f32.mrb[0].mxu0
        %1264 = vmatprep.mubr.f32.mxu0 0.0
        %1265 = vmatmul.mubr.f32.gmra.mrb[0].mxu0 %v1193
        %v1266 = vpop.f32.mrb[0].mxu0
        %v1267 = vadd.f32 0.0, %v1266
        %v1268 = vpop.f32.mrb[0].mxu0
        %1269 = vdwg.mxu0
        %vm1270 = vcmp.gt.f32.partialorder %v1262, 0.5
        %vm1271 = vcmp.gt.f32.partialorder %v1267, 0.5
        %vm1272 = vcmp.lt.s32.totalorder %v1136, %v841
        %vm1273 = vcmp.lt.s32.totalorder %v1136, %v842
        %vm1274 = vcmp.ge.s32.totalorder %v1136, 1
        %vm1275 = vmand %vm1272, %vm1274
        %vm1276 = vmand %vm1273, %vm1274
        %vm1277 = vmand %vm1270, %vm1275
        %vm1278 = vmand %vm1271, %vm1276
        %v1279 = vsel %vm1277, %v1136, 0
        %v1280 = vsel %vm1278, %v1136, 0
        %v1281 = vsel %vm1140, %v1279, 2147483648
        %v1282 = vand.u32 %v1281, 65535
        %v1283 = vshra.s32 %v1281, 16
        %v1284 = vcvt.s32.f32 %v1282
        %v1285 = vcvt.s32.f32 %v1283
        %1286 = vmax.xlane.f32.xlu0 %v1285
        %v1287 = vpop.xlane.xlu0 %1286
        %vm1288 = vcmp.eq.f32.partialorder %v1285, %v1287
        %v1289 = vsel %vm1288, %v1284, -inf
        %1290 = vmax.xlane.f32.xlu0 %v1289
        %v1291 = vpop.xlane.xlu0 %1290
        %v1292 = vcvt.f32.s32 %v1291
        %v1293 = vcvt.f32.s32 %v1287
        %v1294 = vshll.u32 %v1293, 16
        %v1295 = vadd.s32 %v1294, %v1292
        %v1296 = vsel %vm1140, %v1280, 2147483648
        %v1297 = vand.u32 %v1296, 65535
        %v1298 = vshra.s32 %v1296, 16
        %v1299 = vcvt.s32.f32 %v1297
        %v1300 = vcvt.s32.f32 %v1298
        %1301 = vmax.xlane.f32.xlu0 %v1300
        %v1302 = vpop.xlane.xlu0 %1301
        %vm1303 = vcmp.eq.f32.partialorder %v1300, %v1302
        %v1304 = vsel %vm1303, %v1299, -inf
        %1305 = vmax.xlane.f32.xlu0 %v1304
        %v1306 = vpop.xlane.xlu0 %1305
        %v1307 = vcvt.f32.s32 %v1306
        %v1308 = vcvt.f32.s32 %v1302
        %v1309 = vshll.u32 %v1308, 16
        %v1310 = vadd.s32 %v1309, %v1307
        %vm1311 = vcmp.ne.s32.totalorder %v1295, 0
        %vm1312 = vcmp.ne.s32.totalorder %v1310, 0
        %v1313 = vsel %vm1311, %v1295, %v1181
        %v1314 = vsel %vm1312, %v1310, %v1182
        %v1315 = vsel %vm843, 0, %v1313
        %v1316 = vsel %vm844, 0, %v1314
        %vm1317 = vcmp.eq.s32.totalorder %v1136, %v1315
        %vm1318 = vcmp.eq.s32.totalorder %v1136, %v1316
        %v1319 = vsel %vm1317, 1, 0
        %v1320 = vsel %vm1318, 1, 0
        %v1321 = vcvt.s32.f32 %v1319
        %v1322 = vcvt.s32.f32 %v1320
        %1323 = vrot.lane.b32.xlu0 %v957, 32
        %v1324 = vpop.permute.xlu0 %1323
        %1325 = vrot.lane.b32.xlu0 %v959, 32
        %v1326 = vpop.permute.xlu0 %1325
        %1329 = vmatprep.subr.mxu0 0.0
        %1330 = vmatpush1.msra.mxu0 %v1324
        %1331 = vmatprep.subr.mxu0 0.0
        %1332 = vmatpush1.msra.mxu0 %v1326
        %1333 = vmatprep.subr.mxu0 0.0
        %1334 = vmatpush1.msra.mxu0 0.0
        %1335 = vmatprep.subr.mxu0 0.0
        %1336 = vmatpush1.msra.mxu0 0.0
        %1337 = vmatprep.subr.mxu0 0.0
        %1338 = vmatpush1.msra.mxu0 0.0
        %1339 = vmatprep.subr.mxu0 0.0
        %1340 = vmatpush1.msra.mxu0 0.0
        %1341 = vmatprep.subr.mxu0 0.0
        %1342 = vmatpush1.msra.mxu0 0.0
        %1343 = vmatprep.subr.mxu0 0.0
        %1344 = vmatpush1.msra.mxu0 0.0
        %1345 = vmatprep.subr.mxu0 0.0
        %1346 = vmatpush1.msra.mxu0 0.0
        %1347 = vmatprep.subr.mxu0 0.0
        %1348 = vmatpush1.msra.mxu0 0.0
        %1349 = vmatprep.subr.mxu0 0.0
        %1350 = vmatpush1.msra.mxu0 0.0
        %1351 = vmatprep.subr.mxu0 0.0
        %1352 = vmatpush1.msra.mxu0 0.0
        %1353 = vmatprep.subr.mxu0 0.0
        %1354 = vmatpush1.msra.mxu0 0.0
        %1355 = vmatprep.subr.mxu0 0.0
        %1356 = vmatpush1.msra.mxu0 0.0
        %1357 = vmatprep.subr.mxu0 0.0
        %1358 = vmatpush1.msra.mxu0 0.0
        %1359 = vmatprep.subr.mxu0 0.0
        %1360 = vmatpush1.msra.mxu0 0.0
        %1361 = vmatprep.subr.mxu0 0.0
        %1362 = vmatpush1.msra.mxu0 0.0
        %1363 = vmatprep.subr.mxu0 0.0
        %1364 = vmatpush1.msra.mxu0 0.0
        %1365 = vmatprep.subr.mxu0 0.0
        %1366 = vmatpush1.msra.mxu0 0.0
        %1367 = vmatprep.subr.mxu0 0.0
        %1368 = vmatpush1.msra.mxu0 0.0
        %1369 = vmatprep.subr.mxu0 0.0
        %1370 = vmatpush1.msra.mxu0 0.0
        %1371 = vmatprep.subr.mxu0 0.0
        %1372 = vmatpush1.msra.mxu0 0.0
        %1373 = vmatprep.subr.mxu0 0.0
        %1374 = vmatpush1.msra.mxu0 0.0
        %1375 = vmatprep.subr.mxu0 0.0
        %1376 = vmatpush1.msra.mxu0 0.0
        %1377 = vmatprep.subr.mxu0 0.0
        %1378 = vmatpush1.msra.mxu0 0.0
        %1379 = vmatprep.subr.mxu0 0.0
        %1380 = vmatpush1.msra.mxu0 0.0
        %1381 = vmatprep.subr.mxu0 0.0
        %1382 = vmatpush1.msra.mxu0 0.0
        %1383 = vmatprep.subr.mxu0 0.0
        %1384 = vmatpush1.msra.mxu0 0.0
        %1385 = vmatprep.subr.mxu0 0.0
        %1386 = vmatpush1.msra.mxu0 0.0
        %1387 = vmatprep.subr.mxu0 0.0
        %1388 = vmatpush1.msra.mxu0 0.0
        %1389 = vmatprep.subr.mxu0 0.0
        %1390 = vmatpush1.msra.mxu0 0.0
        %1391 = vmatprep.subr.mxu0 0.0
        %1392 = vmatpush1.msra.mxu0 0.0
        %1393 = vmatprep.mubr.f32.mxu0 0.0
        %1394 = vmatmul.mubr.f32.gmra.mrb[0].mxu0 %v1190
        %v1395 = vpop.f32.mrb[0].mxu0
        %v1396 = vadd.f32 0.0, %v1395
        %v1397 = vpop.f32.mrb[0].mxu0
        %1398 = vmatprep.mubr.f32.mxu0 0.0
        %1399 = vmatmul.mubr.f32.gmra.mrb[0].mxu0 %v1193
        %v1400 = vpop.f32.mrb[0].mxu0
        %v1401 = vadd.f32 0.0, %v1400
        %v1402 = vpop.f32.mrb[0].mxu0
        %1403 = vdwg.mxu0
        %1406 = vrot.lane.b32.xlu0 %v958, 96
        %v1407 = vpop.permute.xlu0 %1406
        %1408 = vrot.lane.b32.xlu0 %v960, 96
        %v1409 = vpop.permute.xlu0 %1408
        %v1413 = vsel %vm1140, %v1321, 0
        %v1416 = vsel %vm1140, %v1322, 0
        %1418 = vmatprep.subr.mxu0 0.0
        %1419 = vmatpush1.msra.mxu0 %v1407
        %1420 = vmatprep.subr.mxu0 0.0
        %1421 = vmatpush1.msra.mxu0 %v1409
        %1422 = vmatprep.subr.mxu0 0.0
        %1423 = vmatpush1.msra.mxu0 0.0
        %1424 = vmatprep.subr.mxu0 0.0
        %1425 = vmatpush1.msra.mxu0 0.0
        %1426 = vmatprep.subr.mxu0 0.0
        %1427 = vmatpush1.msra.mxu0 0.0
        %1428 = vmatprep.subr.mxu0 0.0
        %1429 = vmatpush1.msra.mxu0 0.0
        %1430 = vmatprep.subr.mxu0 0.0
        %1431 = vmatpush1.msra.mxu0 0.0
        %1432 = vmatprep.subr.mxu0 0.0
        %1433 = vmatpush1.msra.mxu0 0.0
        %1434 = vmatprep.subr.mxu0 0.0
        %1435 = vmatpush1.msra.mxu0 0.0
        %1436 = vmatprep.subr.mxu0 0.0
        %1437 = vmatpush1.msra.mxu0 0.0
        %1438 = vmatprep.subr.mxu0 0.0
        %1439 = vmatpush1.msra.mxu0 0.0
        %1440 = vmatprep.subr.mxu0 0.0
        %1441 = vmatpush1.msra.mxu0 0.0
        %1442 = vmatprep.subr.mxu0 0.0
        %1443 = vmatpush1.msra.mxu0 0.0
        %1444 = vmatprep.subr.mxu0 0.0
        %1445 = vmatpush1.msra.mxu0 0.0
        %1446 = vmatprep.subr.mxu0 0.0
        %1447 = vmatpush1.msra.mxu0 0.0
        %1448 = vmatprep.subr.mxu0 0.0
        %1449 = vmatpush1.msra.mxu0 0.0
        %1450 = vmatprep.subr.mxu0 0.0
        %1451 = vmatpush1.msra.mxu0 0.0
        %1452 = vmatprep.subr.mxu0 0.0
        %1453 = vmatpush1.msra.mxu0 0.0
        %1454 = vmatprep.subr.mxu0 0.0
        %1455 = vmatpush1.msra.mxu0 0.0
        %1456 = vmatprep.subr.mxu0 0.0
        %1457 = vmatpush1.msra.mxu0 0.0
        %1458 = vmatprep.subr.mxu0 0.0
        %1459 = vmatpush1.msra.mxu0 0.0
        %1460 = vmatprep.subr.mxu0 0.0
        %1461 = vmatpush1.msra.mxu0 0.0
        %1462 = vmatprep.subr.mxu0 0.0
        %1463 = vmatpush1.msra.mxu0 0.0
        %1464 = vmatprep.subr.mxu0 0.0
        %1465 = vmatpush1.msra.mxu0 0.0
        %1466 = vmatprep.subr.mxu0 0.0
        %1467 = vmatpush1.msra.mxu0 0.0
        %1468 = vmatprep.subr.mxu0 0.0
        %1469 = vmatpush1.msra.mxu0 0.0
        %1470 = vmatprep.subr.mxu0 0.0
        %1471 = vmatpush1.msra.mxu0 0.0
        %1472 = vmatprep.subr.mxu0 0.0
        %1473 = vmatpush1.msra.mxu0 0.0
        %1474 = vmatprep.subr.mxu0 0.0
        %1475 = vmatpush1.msra.mxu0 0.0
        %1476 = vmatprep.subr.mxu0 0.0
        %1477 = vmatpush1.msra.mxu0 0.0
        %1478 = vmatprep.subr.mxu0 0.0
        %1479 = vmatpush1.msra.mxu0 0.0
        %1480 = vmatprep.subr.mxu0 0.0
        %1481 = vmatpush1.msra.mxu0 0.0
        %1482 = vmatprep.mubr.f32.mxu0 0.0
        %1483 = vmatmul.mubr.f32.gmra.mrb[0].mxu0 %v1413
        %v1484 = vpop.f32.mrb[0].mxu0
        %v1485 = vadd.f32 0.0, %v1484
        %v1486 = vpop.f32.mrb[0].mxu0
        %1487 = vmatprep.mubr.f32.mxu0 0.0
        %1488 = vmatmul.mubr.f32.gmra.mrb[0].mxu0 %v1416
        %v1489 = vpop.f32.mrb[0].mxu0
        %v1490 = vadd.f32 0.0, %v1489
        %v1491 = vpop.f32.mrb[0].mxu0
        %1492 = vdwg.mxu0
        %v1493 = vld [vmem:[%s7] sm:$0xff]
        %v1494 = vld [vmem:[%s7 + $0x8] sm:$0xff]
        %v1495 = vld [vmem:[%s7 + $0x10] sm:$0xff]
        %v1496 = vld [vmem:[%s7 + $0x18] sm:$0xff]
        %v1497 = vld [vmem:[%s8] sm:$0xff]
        %v1498 = vld [vmem:[%s8 + $0x8] sm:$0xff]
        %v1499 = vld [vmem:[%s8 + $0x10] sm:$0xff]
        %v1500 = vld [vmem:[%s8 + $0x18] sm:$0xff]
        %v1502 = vsel %vm756, %v1396, 0
        %v1505 = vsel %vm756, %v1401, 0
        %1507 = vmatprep.subr.mxu0 0.0
        %1508 = vmatpush1.msra.mxu0 %v1497
        %1509 = vmatprep.subr.mxu0 0.0
        %1510 = vmatpush1.msra.mxu0 %v1498
        %1511 = vmatprep.subr.mxu0 0.0
        %1512 = vmatpush1.msra.mxu0 %v1499
        %1513 = vmatprep.subr.mxu0 0.0
        %1514 = vmatpush1.msra.mxu0 %v1500
        %1515 = vmatprep.subr.mxu0 0.0
        %1516 = vmatpush1.msra.mxu0 0.0
        %1517 = vmatprep.subr.mxu0 0.0
        %1518 = vmatpush1.msra.mxu0 0.0
        %1519 = vmatprep.subr.mxu0 0.0
        %1520 = vmatpush1.msra.mxu0 0.0
        %1521 = vmatprep.subr.mxu0 0.0
        %1522 = vmatpush1.msra.mxu0 0.0
        %1523 = vmatprep.subr.mxu0 0.0
        %1524 = vmatpush1.msra.mxu0 0.0
        %1525 = vmatprep.subr.mxu0 0.0
        %1526 = vmatpush1.msra.mxu0 0.0
        %1527 = vmatprep.subr.mxu0 0.0
        %1528 = vmatpush1.msra.mxu0 0.0
        %1529 = vmatprep.subr.mxu0 0.0
        %1530 = vmatpush1.msra.mxu0 0.0
        %1531 = vmatprep.subr.mxu0 0.0
        %1532 = vmatpush1.msra.mxu0 0.0
        %1533 = vmatprep.subr.mxu0 0.0
        %1534 = vmatpush1.msra.mxu0 0.0
        %1535 = vmatprep.subr.mxu0 0.0
        %1536 = vmatpush1.msra.mxu0 0.0
        %1537 = vmatprep.subr.mxu0 0.0
        %1538 = vmatpush1.msra.mxu0 0.0
        %1539 = vmatprep.subr.mxu0 0.0
        %1540 = vmatpush1.msra.mxu0 0.0
        %1541 = vmatprep.subr.mxu0 0.0
        %1542 = vmatpush1.msra.mxu0 0.0
        %1543 = vmatprep.subr.mxu0 0.0
        %1544 = vmatpush1.msra.mxu0 0.0
        %1545 = vmatprep.subr.mxu0 0.0
        %1546 = vmatpush1.msra.mxu0 0.0
        %1547 = vmatprep.subr.mxu0 0.0
        %1548 = vmatpush1.msra.mxu0 0.0
        %1549 = vmatprep.subr.mxu0 0.0
        %1550 = vmatpush1.msra.mxu0 0.0
        %1551 = vmatprep.subr.mxu0 0.0
        %1552 = vmatpush1.msra.mxu0 0.0
        %1553 = vmatprep.subr.mxu0 0.0
        %1554 = vmatpush1.msra.mxu0 0.0
        %1555 = vmatprep.subr.mxu0 0.0
        %1556 = vmatpush1.msra.mxu0 0.0
        %1557 = vmatprep.subr.mxu0 0.0
        %1558 = vmatpush1.msra.mxu0 0.0
        %1559 = vmatprep.subr.mxu0 0.0
        %1560 = vmatpush1.msra.mxu0 0.0
        %1561 = vmatprep.subr.mxu0 0.0
        %1562 = vmatpush1.msra.mxu0 0.0
        %1563 = vmatprep.subr.mxu0 0.0
        %1564 = vmatpush1.msra.mxu0 0.0
        %1565 = vmatprep.subr.mxu0 0.0
        %1566 = vmatpush1.msra.mxu0 0.0
        %1567 = vmatprep.subr.mxu0 0.0
        %1568 = vmatpush1.msra.mxu0 0.0
        %1569 = vmatprep.subr.mxu0 0.0
        %1570 = vmatpush1.msra.mxu0 0.0
        %1571 = vmatprep.mubr.f32.mxu0 0.0
        %1572 = vmatmul.mubr.f32.gmra.mrb[0].mxu0 %v1502
        %v1573 = vpop.f32.mrb[0].mxu0
        %v1574 = vadd.f32 0.0, %v1573
        %v1575 = vpop.f32.mrb[0].mxu0
        %1576 = vmatprep.mubr.f32.mxu0 0.0
        %1577 = vmatmul.mubr.f32.gmra.mrb[0].mxu0 %v1505
        %v1578 = vpop.f32.mrb[0].mxu0
        %v1579 = vadd.f32 0.0, %v1578
        %v1580 = vpop.f32.mrb[0].mxu0
        %1581 = vdwg.mxu0
        %1582 = vrot.lane.b32.xlu0 %v957, 64
        %v1583 = vpop.permute.xlu0 %1582
        %1584 = vrot.lane.b32.xlu0 %v959, 64
        %v1585 = vpop.permute.xlu0 %1584
        %v1586 = vsel %vm756, %v1583, 0
        %v1588 = vsel %vm756, %v1585, 0
        %1590 = vmatprep.subr.mxu0 0.0
        %1591 = vmatpush1.msra.mxu0 %v1493
        %1592 = vmatprep.subr.mxu0 0.0
        %1593 = vmatpush1.msra.mxu0 %v1494
        %1594 = vmatprep.subr.mxu0 0.0
        %1595 = vmatpush1.msra.mxu0 %v1495
        %1596 = vmatprep.subr.mxu0 0.0
        %1597 = vmatpush1.msra.mxu0 %v1496
        %1598 = vmatprep.subr.mxu0 0.0
        %1599 = vmatpush1.msra.mxu0 0.0
        %1600 = vmatprep.subr.mxu0 0.0
        %1601 = vmatpush1.msra.mxu0 0.0
        %1602 = vmatprep.subr.mxu0 0.0
        %1603 = vmatpush1.msra.mxu0 0.0
        %1604 = vmatprep.subr.mxu0 0.0
        %1605 = vmatpush1.msra.mxu0 0.0
        %1606 = vmatprep.subr.mxu0 0.0
        %1607 = vmatpush1.msra.mxu0 0.0
        %1608 = vmatprep.subr.mxu0 0.0
        %1609 = vmatpush1.msra.mxu0 0.0
        %1610 = vmatprep.subr.mxu0 0.0
        %1611 = vmatpush1.msra.mxu0 0.0
        %1612 = vmatprep.subr.mxu0 0.0
        %1613 = vmatpush1.msra.mxu0 0.0
        %1614 = vmatprep.subr.mxu0 0.0
        %1615 = vmatpush1.msra.mxu0 0.0
        %1616 = vmatprep.subr.mxu0 0.0
        %1617 = vmatpush1.msra.mxu0 0.0
        %1618 = vmatprep.subr.mxu0 0.0
        %1619 = vmatpush1.msra.mxu0 0.0
        %1620 = vmatprep.subr.mxu0 0.0
        %1621 = vmatpush1.msra.mxu0 0.0
        %1622 = vmatprep.subr.mxu0 0.0
        %1623 = vmatpush1.msra.mxu0 0.0
        %1624 = vmatprep.subr.mxu0 0.0
        %1625 = vmatpush1.msra.mxu0 0.0
        %1626 = vmatprep.subr.mxu0 0.0
        %1627 = vmatpush1.msra.mxu0 0.0
        %1628 = vmatprep.subr.mxu0 0.0
        %1629 = vmatpush1.msra.mxu0 0.0
        %1630 = vmatprep.subr.mxu0 0.0
        %1631 = vmatpush1.msra.mxu0 0.0
        %1632 = vmatprep.subr.mxu0 0.0
        %1633 = vmatpush1.msra.mxu0 0.0
        %1634 = vmatprep.subr.mxu0 0.0
        %1635 = vmatpush1.msra.mxu0 0.0
        %1636 = vmatprep.subr.mxu0 0.0
        %1637 = vmatpush1.msra.mxu0 0.0
        %1638 = vmatprep.subr.mxu0 0.0
        %1639 = vmatpush1.msra.mxu0 0.0
        %1640 = vmatprep.subr.mxu0 0.0
        %1641 = vmatpush1.msra.mxu0 0.0
        %1642 = vmatprep.subr.mxu0 0.0
        %1643 = vmatpush1.msra.mxu0 0.0
        %1644 = vmatprep.subr.mxu0 0.0
        %1645 = vmatpush1.msra.mxu0 0.0
        %1646 = vmatprep.subr.mxu0 0.0
        %1647 = vmatpush1.msra.mxu0 0.0
        %1648 = vmatprep.subr.mxu0 0.0
        %1649 = vmatpush1.msra.mxu0 0.0
        %1650 = vmatprep.subr.mxu0 0.0
        %1651 = vmatpush1.msra.mxu0 0.0
        %1652 = vmatprep.subr.mxu0 0.0
        %1653 = vmatpush1.msra.mxu0 0.0
        %1654 = vmatprep.mubr.f32.mxu0 0.0
        %1655 = vmatmul.mubr.f32.gmra.mrb[0].mxu0 %v1586
        %v1656 = vpop.f32.mrb[0].mxu0
        %v1657 = vadd.f32 %v1574, %v1656
        %v1658 = vpop.f32.mrb[0].mxu0
        %1659 = vmatprep.mubr.f32.mxu0 0.0
        %1660 = vmatmul.mubr.f32.gmra.mrb[0].mxu0 %v1588
        %v1661 = vpop.f32.mrb[0].mxu0
        %v1662 = vadd.f32 %v1579, %v1661
        %v1663 = vpop.f32.mrb[0].mxu0
        %1664 = vdwg.mxu0
        %v1665 = vld [vmem:[%s9] sm:$0x1]
        %v1667 = vlaneseq
        %v1668 = vshrl.u32 %v1667, 7
        %v1669 = vsub.s32 0, %v1668
        %v1670 = vrot.slane %v1665, %v1669
        %v1672 = vadd.f32 %v1657, %v1670
        %v1673 = vadd.f32 %v1662, %v1670
        %v1674 = vtanh.pop %v1672
        %v1675 = vtanh.pop %v1673
        %v1676 = vld [vmem:[%s10] sm:$0xff]
        %v1677 = vld [vmem:[%s10 + $0x8] sm:$0xff]
        %v1678 = vld [vmem:[%s10 + $0x10] sm:$0xff]
        %v1679 = vld [vmem:[%s10 + $0x18] sm:$0xff]
        %v1680 = vld [vmem:[%s11] sm:$0x1]
        %v1682 = vlaneseq
        %v1683 = vshrl.u32 %v1682, 7
        %v1684 = vsub.s32 0, %v1683
        %v1685 = vrot.slane %v1680, %v1684
        %v1688 = vsel %vm756, %v1674, 0
        %v1691 = vsel %vm756, %v1675, 0
        %1693 = vmatprep.subr.mxu0 0.0
        %1694 = vmatpush1.msra.mxu0 %v1676
        %1695 = vmatprep.subr.mxu0 0.0
        %1696 = vmatpush1.msra.mxu0 %v1677
        %1697 = vmatprep.subr.mxu0 0.0
        %1698 = vmatpush1.msra.mxu0 %v1678
        %1699 = vmatprep.subr.mxu0 0.0
        %1700 = vmatpush1.msra.mxu0 %v1679
        %1701 = vmatprep.subr.mxu0 0.0
        %1702 = vmatpush1.msra.mxu0 0.0
        %1703 = vmatprep.subr.mxu0 0.0
        %1704 = vmatpush1.msra.mxu0 0.0
        %1705 = vmatprep.subr.mxu0 0.0
        %1706 = vmatpush1.msra.mxu0 0.0
        %1707 = vmatprep.subr.mxu0 0.0
        %1708 = vmatpush1.msra.mxu0 0.0
        %1709 = vmatprep.subr.mxu0 0.0
        %1710 = vmatpush1.msra.mxu0 0.0
        %1711 = vmatprep.subr.mxu0 0.0
        %1712 = vmatpush1.msra.mxu0 0.0
        %1713 = vmatprep.subr.mxu0 0.0
        %1714 = vmatpush1.msra.mxu0 0.0
        %1715 = vmatprep.subr.mxu0 0.0
        %1716 = vmatpush1.msra.mxu0 0.0
        %1717 = vmatprep.subr.mxu0 0.0
        %1718 = vmatpush1.msra.mxu0 0.0
        %1719 = vmatprep.subr.mxu0 0.0
        %1720 = vmatpush1.msra.mxu0 0.0
        %1721 = vmatprep.subr.mxu0 0.0
        %1722 = vmatpush1.msra.mxu0 0.0
        %1723 = vmatprep.subr.mxu0 0.0
        %1724 = vmatpush1.msra.mxu0 0.0
        %1725 = vmatprep.subr.mxu0 0.0
        %1726 = vmatpush1.msra.mxu0 0.0
        %1727 = vmatprep.subr.mxu0 0.0
        %1728 = vmatpush1.msra.mxu0 0.0
        %1729 = vmatprep.subr.mxu0 0.0
        %1730 = vmatpush1.msra.mxu0 0.0
        %1731 = vmatprep.subr.mxu0 0.0
        %1732 = vmatpush1.msra.mxu0 0.0
        %1733 = vmatprep.subr.mxu0 0.0
        %1734 = vmatpush1.msra.mxu0 0.0
        %1735 = vmatprep.subr.mxu0 0.0
        %1736 = vmatpush1.msra.mxu0 0.0
        %1737 = vmatprep.subr.mxu0 0.0
        %1738 = vmatpush1.msra.mxu0 0.0
        %1739 = vmatprep.subr.mxu0 0.0
        %1740 = vmatpush1.msra.mxu0 0.0
        %1741 = vmatprep.subr.mxu0 0.0
        %1742 = vmatpush1.msra.mxu0 0.0
        %1743 = vmatprep.subr.mxu0 0.0
        %1744 = vmatpush1.msra.mxu0 0.0
        %1745 = vmatprep.subr.mxu0 0.0
        %1746 = vmatpush1.msra.mxu0 0.0
        %1747 = vmatprep.subr.mxu0 0.0
        %1748 = vmatpush1.msra.mxu0 0.0
        %1749 = vmatprep.subr.mxu0 0.0
        %1750 = vmatpush1.msra.mxu0 0.0
        %1751 = vmatprep.subr.mxu0 0.0
        %1752 = vmatpush1.msra.mxu0 0.0
        %1753 = vmatprep.subr.mxu0 0.0
        %1754 = vmatpush1.msra.mxu0 0.0
        %1755 = vmatprep.subr.mxu0 0.0
        %1756 = vmatpush1.msra.mxu0 0.0
        %1757 = vmatprep.mubr.f32.mxu0 0.0
        %1758 = vmatmul.mubr.f32.gmra.mrb[0].mxu0 %v1688
        %v1759 = vpop.f32.mrb[0].mxu0
        %v1760 = vadd.f32 %v1685, %v1759
        %v1761 = vpop.f32.mrb[0].mxu0
        %1762 = vmatprep.mubr.f32.mxu0 0.0
        %1763 = vmatmul.mubr.f32.gmra.mrb[0].mxu0 %v1691
        %v1764 = vpop.f32.mrb[0].mxu0
        %v1765 = vadd.f32 %v1685, %v1764
        %v1766 = vpop.f32.mrb[0].mxu0
        %1767 = vdwg.mxu0
        %v1768 = vld [vmem:[%s12] sm:$0xff]
        %v1769 = vld [vmem:[%s12 + $0x8] sm:$0xff]
        %v1770 = vld [vmem:[%s12 + $0x10] sm:$0xff]
        %v1771 = vld [vmem:[%s12 + $0x18] sm:$0xff]
        %v1772 = vld [vmem:[%s13] sm:$0xff]
        %v1773 = vld [vmem:[%s13 + $0x8] sm:$0xff]
        %v1774 = vld [vmem:[%s13 + $0x10] sm:$0xff]
        %v1775 = vld [vmem:[%s13 + $0x18] sm:$0xff]
        %v1777 = vsel %vm756, %v1485, 0
        %v1780 = vsel %vm756, %v1490, 0
        %1782 = vmatprep.subr.mxu0 0.0
        %1783 = vmatpush1.msra.mxu0 %v1772
        %1784 = vmatprep.subr.mxu0 0.0
        %1785 = vmatpush1.msra.mxu0 %v1773
        %1786 = vmatprep.subr.mxu0 0.0
        %1787 = vmatpush1.msra.mxu0 %v1774
        %1788 = vmatprep.subr.mxu0 0.0
        %1789 = vmatpush1.msra.mxu0 %v1775
        %1790 = vmatprep.subr.mxu0 0.0
        %1791 = vmatpush1.msra.mxu0 0.0
        %1792 = vmatprep.subr.mxu0 0.0
        %1793 = vmatpush1.msra.mxu0 0.0
        %1794 = vmatprep.subr.mxu0 0.0
        %1795 = vmatpush1.msra.mxu0 0.0
        %1796 = vmatprep.subr.mxu0 0.0
        %1797 = vmatpush1.msra.mxu0 0.0
        %1798 = vmatprep.subr.mxu0 0.0
        %1799 = vmatpush1.msra.mxu0 0.0
        %1800 = vmatprep.subr.mxu0 0.0
        %1801 = vmatpush1.msra.mxu0 0.0
        %1802 = vmatprep.subr.mxu0 0.0
        %1803 = vmatpush1.msra.mxu0 0.0
        %1804 = vmatprep.subr.mxu0 0.0
        %1805 = vmatpush1.msra.mxu0 0.0
        %1806 = vmatprep.subr.mxu0 0.0
        %1807 = vmatpush1.msra.mxu0 0.0
        %1808 = vmatprep.subr.mxu0 0.0
        %1809 = vmatpush1.msra.mxu0 0.0
        %1810 = vmatprep.subr.mxu0 0.0
        %1811 = vmatpush1.msra.mxu0 0.0
        %1812 = vmatprep.subr.mxu0 0.0
        %1813 = vmatpush1.msra.mxu0 0.0
        %1814 = vmatprep.subr.mxu0 0.0
        %1815 = vmatpush1.msra.mxu0 0.0
        %1816 = vmatprep.subr.mxu0 0.0
        %1817 = vmatpush1.msra.mxu0 0.0
        %1818 = vmatprep.subr.mxu0 0.0
        %1819 = vmatpush1.msra.mxu0 0.0
        %1820 = vmatprep.subr.mxu0 0.0
        %1821 = vmatpush1.msra.mxu0 0.0
        %1822 = vmatprep.subr.mxu0 0.0
        %1823 = vmatpush1.msra.mxu0 0.0
        %1824 = vmatprep.subr.mxu0 0.0
        %1825 = vmatpush1.msra.mxu0 0.0
        %1826 = vmatprep.subr.mxu0 0.0
        %1827 = vmatpush1.msra.mxu0 0.0
        %1828 = vmatprep.subr.mxu0 0.0
        %1829 = vmatpush1.msra.mxu0 0.0
        %1830 = vmatprep.subr.mxu0 0.0
        %1831 = vmatpush1.msra.mxu0 0.0
        %1832 = vmatprep.subr.mxu0 0.0
        %1833 = vmatpush1.msra.mxu0 0.0
        %1834 = vmatprep.subr.mxu0 0.0
        %1835 = vmatpush1.msra.mxu0 0.0
        %1836 = vmatprep.subr.mxu0 0.0
        %1837 = vmatpush1.msra.mxu0 0.0
        %1838 = vmatprep.subr.mxu0 0.0
        %1839 = vmatpush1.msra.mxu0 0.0
        %1840 = vmatprep.subr.mxu0 0.0
        %1841 = vmatpush1.msra.mxu0 0.0
        %1842 = vmatprep.subr.mxu0 0.0
        %1843 = vmatpush1.msra.mxu0 0.0
        %1844 = vmatprep.subr.mxu0 0.0
        %1845 = vmatpush1.msra.mxu0 0.0
        %1846 = vmatprep.mubr.f32.mxu0 0.0
        %1847 = vmatmul.mubr.f32.gmra.mrb[0].mxu0 %v1777
        %v1848 = vpop.f32.mrb[0].mxu0
        %v1849 = vadd.f32 0.0, %v1848
        %v1850 = vpop.f32.mrb[0].mxu0
        %1851 = vmatprep.mubr.f32.mxu0 0.0
        %1852 = vmatmul.mubr.f32.gmra.mrb[0].mxu0 %v1780
        %v1853 = vpop.f32.mrb[0].mxu0
        %v1854 = vadd.f32 0.0, %v1853
        %v1855 = vpop.f32.mrb[0].mxu0
        %1856 = vdwg.mxu0
        %v1857 = vsel %vm756, %v958, 0
        %v1859 = vsel %vm756, %v960, 0
        %1861 = vmatprep.subr.mxu0 0.0
        %1862 = vmatpush1.msra.mxu0 %v1768
        %1863 = vmatprep.subr.mxu0 0.0
        %1864 = vmatpush1.msra.mxu0 %v1769
        %1865 = vmatprep.subr.mxu0 0.0
        %1866 = vmatpush1.msra.mxu0 %v1770
        %1867 = vmatprep.subr.mxu0 0.0
        %1868 = vmatpush1.msra.mxu0 %v1771
        %1869 = vmatprep.subr.mxu0 0.0
        %1870 = vmatpush1.msra.mxu0 0.0
        %1871 = vmatprep.subr.mxu0 0.0
        %1872 = vmatpush1.msra.mxu0 0.0
        %1873 = vmatprep.subr.mxu0 0.0
        %1874 = vmatpush1.msra.mxu0 0.0
        %1875 = vmatprep.subr.mxu0 0.0
        %1876 = vmatpush1.msra.mxu0 0.0
        %1877 = vmatprep.subr.mxu0 0.0
        %1878 = vmatpush1.msra.mxu0 0.0
        %1879 = vmatprep.subr.mxu0 0.0
        %1880 = vmatpush1.msra.mxu0 0.0
        %1881 = vmatprep.subr.mxu0 0.0
        %1882 = vmatpush1.msra.mxu0 0.0
        %1883 = vmatprep.subr.mxu0 0.0
        %1884 = vmatpush1.msra.mxu0 0.0
        %1885 = vmatprep.subr.mxu0 0.0
        %1886 = vmatpush1.msra.mxu0 0.0
        %1887 = vmatprep.subr.mxu0 0.0
        %1888 = vmatpush1.msra.mxu0 0.0
        %1889 = vmatprep.subr.mxu0 0.0
        %1890 = vmatpush1.msra.mxu0 0.0
        %1891 = vmatprep.subr.mxu0 0.0
        %1892 = vmatpush1.msra.mxu0 0.0
        %1893 = vmatprep.subr.mxu0 0.0
        %1894 = vmatpush1.msra.mxu0 0.0
        %1895 = vmatprep.subr.mxu0 0.0
        %1896 = vmatpush1.msra.mxu0 0.0
        %1897 = vmatprep.subr.mxu0 0.0
        %1898 = vmatpush1.msra.mxu0 0.0
        %1899 = vmatprep.subr.mxu0 0.0
        %1900 = vmatpush1.msra.mxu0 0.0
        %1901 = vmatprep.subr.mxu0 0.0
        %1902 = vmatpush1.msra.mxu0 0.0
        %1903 = vmatprep.subr.mxu0 0.0
        %1904 = vmatpush1.msra.mxu0 0.0
        %1905 = vmatprep.subr.mxu0 0.0
        %1906 = vmatpush1.msra.mxu0 0.0
        %1907 = vmatprep.subr.mxu0 0.0
        %1908 = vmatpush1.msra.mxu0 0.0
        %1909 = vmatprep.subr.mxu0 0.0
        %1910 = vmatpush1.msra.mxu0 0.0
        %1911 = vmatprep.subr.mxu0 0.0
        %1912 = vmatpush1.msra.mxu0 0.0
        %1913 = vmatprep.subr.mxu0 0.0
        %1914 = vmatpush1.msra.mxu0 0.0
        %1915 = vmatprep.subr.mxu0 0.0
        %1916 = vmatpush1.msra.mxu0 0.0
        %1917 = vmatprep.subr.mxu0 0.0
        %1918 = vmatpush1.msra.mxu0 0.0
        %1919 = vmatprep.subr.mxu0 0.0
        %1920 = vmatpush1.msra.mxu0 0.0
        %1921 = vmatprep.subr.mxu0 0.0
        %1922 = vmatpush1.msra.mxu0 0.0
        %1923 = vmatprep.subr.mxu0 0.0
        %1924 = vmatpush1.msra.mxu0 0.0
        %1925 = vmatprep.mubr.f32.mxu0 0.0
        %1926 = vmatmul.mubr.f32.gmra.mrb[0].mxu0 %v1857
        %v1927 = vpop.f32.mrb[0].mxu0
        %v1928 = vadd.f32 %v1849, %v1927
        %v1929 = vpop.f32.mrb[0].mxu0
        %1930 = vmatprep.mubr.f32.mxu0 0.0
        %1931 = vmatmul.mubr.f32.gmra.mrb[0].mxu0 %v1859
        %v1932 = vpop.f32.mrb[0].mxu0
        %v1933 = vadd.f32 %v1854, %v1932
        %v1934 = vpop.f32.mrb[0].mxu0
        %1935 = vdwg.mxu0
        %v1936 = vld [vmem:[%s14] sm:$0x1]
        %v1938 = vlaneseq
        %v1939 = vshrl.u32 %v1938, 7
        %v1940 = vsub.s32 0, %v1939
        %v1941 = vrot.slane %v1936, %v1940
        %v1943 = vadd.f32 %v1928, %v1941
        %v1944 = vadd.f32 %v1933, %v1941
        %v1945 = vtanh.pop %v1943
        %v1946 = vtanh.pop %v1944
        %v1947 = vld [vmem:[%s15] sm:$0xff]
        %v1948 = vld [vmem:[%s15 + $0x8] sm:$0xff]
        %v1949 = vld [vmem:[%s15 + $0x10] sm:$0xff]
        %v1950 = vld [vmem:[%s15 + $0x18] sm:$0xff]
        %v1951 = vld [vmem:[%s16] sm:$0x1]
        %v1953 = vlaneseq
        %v1954 = vshrl.u32 %v1953, 7
        %v1955 = vsub.s32 0, %v1954
        %v1956 = vrot.slane %v1951, %v1955
        %v1959 = vsel %vm756, %v1945, 0
        %v1962 = vsel %vm756, %v1946, 0
        %1964 = vmatprep.subr.mxu0 0.0
        %1965 = vmatpush1.msra.mxu0 %v1947
        %1966 = vmatprep.subr.mxu0 0.0
        %1967 = vmatpush1.msra.mxu0 %v1948
        %1968 = vmatprep.subr.mxu0 0.0
        %1969 = vmatpush1.msra.mxu0 %v1949
        %1970 = vmatprep.subr.mxu0 0.0
        %1971 = vmatpush1.msra.mxu0 %v1950
        %1972 = vmatprep.subr.mxu0 0.0
        %1973 = vmatpush1.msra.mxu0 0.0
        %1974 = vmatprep.subr.mxu0 0.0
        %1975 = vmatpush1.msra.mxu0 0.0
        %1976 = vmatprep.subr.mxu0 0.0
        %1977 = vmatpush1.msra.mxu0 0.0
        %1978 = vmatprep.subr.mxu0 0.0
        %1979 = vmatpush1.msra.mxu0 0.0
        %1980 = vmatprep.subr.mxu0 0.0
        %1981 = vmatpush1.msra.mxu0 0.0
        %1982 = vmatprep.subr.mxu0 0.0
        %1983 = vmatpush1.msra.mxu0 0.0
        %1984 = vmatprep.subr.mxu0 0.0
        %1985 = vmatpush1.msra.mxu0 0.0
        %1986 = vmatprep.subr.mxu0 0.0
        %1987 = vmatpush1.msra.mxu0 0.0
        %1988 = vmatprep.subr.mxu0 0.0
        %1989 = vmatpush1.msra.mxu0 0.0
        %1990 = vmatprep.subr.mxu0 0.0
        %1991 = vmatpush1.msra.mxu0 0.0
        %1992 = vmatprep.subr.mxu0 0.0
        %1993 = vmatpush1.msra.mxu0 0.0
        %1994 = vmatprep.subr.mxu0 0.0
        %1995 = vmatpush1.msra.mxu0 0.0
        %1996 = vmatprep.subr.mxu0 0.0
        %1997 = vmatpush1.msra.mxu0 0.0
        %1998 = vmatprep.subr.mxu0 0.0
        %1999 = vmatpush1.msra.mxu0 0.0
        %2000 = vmatprep.subr.mxu0 0.0
        %2001 = vmatpush1.msra.mxu0 0.0
        %2002 = vmatprep.subr.mxu0 0.0
        %2003 = vmatpush1.msra.mxu0 0.0
        %2004 = vmatprep.subr.mxu0 0.0
        %2005 = vmatpush1.msra.mxu0 0.0
        %2006 = vmatprep.subr.mxu0 0.0
        %2007 = vmatpush1.msra.mxu0 0.0
        %2008 = vmatprep.subr.mxu0 0.0
        %2009 = vmatpush1.msra.mxu0 0.0
        %2010 = vmatprep.subr.mxu0 0.0
        %2011 = vmatpush1.msra.mxu0 0.0
        %2012 = vmatprep.subr.mxu0 0.0
        %2013 = vmatpush1.msra.mxu0 0.0
        %2014 = vmatprep.subr.mxu0 0.0
        %2015 = vmatpush1.msra.mxu0 0.0
        %2016 = vmatprep.subr.mxu0 0.0
        %2017 = vmatpush1.msra.mxu0 0.0
        %2018 = vmatprep.subr.mxu0 0.0
        %2019 = vmatpush1.msra.mxu0 0.0
        %2020 = vmatprep.subr.mxu0 0.0
        %2021 = vmatpush1.msra.mxu0 0.0
        %2022 = vmatprep.subr.mxu0 0.0
        %2023 = vmatpush1.msra.mxu0 0.0
        %2024 = vmatprep.subr.mxu0 0.0
        %2025 = vmatpush1.msra.mxu0 0.0
        %2026 = vmatprep.subr.mxu0 0.0
        %2027 = vmatpush1.msra.mxu0 0.0
        %2028 = vmatprep.mubr.f32.mxu0 0.0
        %2029 = vmatmul.mubr.f32.gmra.mrb[0].mxu0 %v1959
        %v2030 = vpop.f32.mrb[0].mxu0
        %v2031 = vadd.f32 %v1956, %v2030
        %v2032 = vpop.f32.mrb[0].mxu0
        %2033 = vmatprep.mubr.f32.mxu0 0.0
        %2034 = vmatmul.mubr.f32.gmra.mrb[0].mxu0 %v1962
        %v2035 = vpop.f32.mrb[0].mxu0
        %v2036 = vadd.f32 %v1956, %v2035
        %v2037 = vpop.f32.mrb[0].mxu0
        %2038 = vdwg.mxu0
        %vm2039 = vcmask 31744
        %v2040 = vsel %vm2039, %v1760, -inf
        %2041 = vmax.xlane.f32.xlu0 %v2040
        %v2042 = vpop.xlane.xlu0 %2041
        %v2043 = vsel %vm2039, %v1765, -inf
        %2044 = vmax.xlane.f32.xlu0 %v2043
        %v2045 = vpop.xlane.xlu0 %2044
        %vm2046 = vcmp.eq.f32.partialorder %v1760, %v2042
        %vm2047 = vcmp.eq.f32.partialorder %v1765, %v2045
        %v2048 = vsel %vm2046, %v1136, 4
        %v2049 = vsel %vm2047, %v1136, 4
        %v2050 = vsel %vm2039, %v2048, 2147483647
        %v2051 = vand.u32 %v2050, 65535
        %v2052 = vshra.s32 %v2050, 16
        %v2053 = vcvt.s32.f32 %v2051
        %v2054 = vcvt.s32.f32 %v2052
        %2055 = vmin.xlane.f32.xlu0 %v2054
        %v2056 = vpop.xlane.xlu0 %2055
        %vm2057 = vcmp.eq.f32.partialorder %v2054, %v2056
        %v2058 = vsel %vm2057, %v2053, inf
        %2059 = vmin.xlane.f32.xlu0 %v2058
        %v2060 = vpop.xlane.xlu0 %2059
        %v2061 = vcvt.f32.s32 %v2060
        %v2062 = vcvt.f32.s32 %v2056
        %v2063 = vshll.u32 %v2062, 16
        %v2064 = vadd.s32 %v2063, %v2061
        %v2065 = vsel %vm2039, %v2049, 2147483647
        %v2066 = vand.u32 %v2065, 65535
        %v2067 = vshra.s32 %v2065, 16
        %v2068 = vcvt.s32.f32 %v2066
        %v2069 = vcvt.s32.f32 %v2067
        %2070 = vmin.xlane.f32.xlu0 %v2069
        %v2071 = vpop.xlane.xlu0 %2070
        %vm2072 = vcmp.eq.f32.partialorder %v2069, %v2071
        %v2073 = vsel %vm2072, %v2068, inf
        %2074 = vmin.xlane.f32.xlu0 %v2073
        %v2075 = vpop.xlane.xlu0 %2074
        %v2076 = vcvt.f32.s32 %v2075
        %v2077 = vcvt.f32.s32 %v2071
        %v2078 = vshll.u32 %v2077, 16
        %v2079 = vadd.s32 %v2078, %v2076
        %vm2080 = vcmask 23552
        %v2081 = vsel %vm2080, %v2031, -inf
        %2082 = vmax.xlane.f32.xlu0 %v2081
        %v2083 = vpop.xlane.xlu0 %2082
        %v2084 = vsel %vm2080, %v2036, -inf
        %2085 = vmax.xlane.f32.xlu0 %v2084
        %v2086 = vpop.xlane.xlu0 %2085
        %vm2087 = vcmp.eq.f32.partialorder %v2031, %v2083
        %vm2088 = vcmp.eq.f32.partialorder %v2036, %v2086
        %v2089 = vsel %vm2087, %v1136, 3
        %v2090 = vsel %vm2088, %v1136, 3
        %v2091 = vsel %vm2080, %v2089, 2147483647
        %v2092 = vand.u32 %v2091, 65535
        %v2093 = vshra.s32 %v2091, 16
        %v2094 = vcvt.s32.f32 %v2092
        %v2095 = vcvt.s32.f32 %v2093
        %2096 = vmin.xlane.f32.xlu0 %v2095
        %v2097 = vpop.xlane.xlu0 %2096
        %vm2098 = vcmp.eq.f32.partialorder %v2095, %v2097
        %v2099 = vsel %vm2098, %v2094, inf
        %2100 = vmin.xlane.f32.xlu0 %v2099
        %v2101 = vpop.xlane.xlu0 %2100
        %v2102 = vcvt.f32.s32 %v2101
        %v2103 = vcvt.f32.s32 %v2097
        %v2104 = vshll.u32 %v2103, 16
        %v2105 = vadd.s32 %v2104, %v2102
        %v2106 = vsel %vm2080, %v2090, 2147483647
        %v2107 = vand.u32 %v2106, 65535
        %v2108 = vshra.s32 %v2106, 16
        %v2109 = vcvt.s32.f32 %v2107
        %v2110 = vcvt.s32.f32 %v2108
        %2111 = vmin.xlane.f32.xlu0 %v2110
        %v2112 = vpop.xlane.xlu0 %2111
        %vm2113 = vcmp.eq.f32.partialorder %v2110, %v2112
        %v2114 = vsel %vm2113, %v2109, inf
        %2115 = vmin.xlane.f32.xlu0 %v2114
        %v2116 = vpop.xlane.xlu0 %2115
        %v2117 = vcvt.f32.s32 %v2116
        %v2118 = vcvt.f32.s32 %v2112
        %v2119 = vshll.u32 %v2118, 16
        %v2120 = vadd.s32 %v2119, %v2117
        %vm2121 = vcmask 7168
        %2122 = vst.msk [vmem:[%s722] sm:$0xff] %vm2121, %v1181
        %2123 = vst.msk [vmem:[%s722 + $0x8] sm:$0xff] %vm2121, %v1182
        %2124 = vst.msk [vmem:[%s727] sm:$0xff] %vm2121, %v1315
        %2125 = vst.msk [vmem:[%s727 + $0x8] sm:$0xff] %vm2121, %v1316
        %2126 = vst.msk [vmem:[%s691] sm:$0xff] %vm2039, %v1760
        %2127 = vst.msk [vmem:[%s691 + $0x8] sm:$0xff] %vm2039, %v1765
        %2128 = vst.msk [vmem:[%s732] sm:$0xff] %vm2080, %v2031
        %2129 = vst.msk [vmem:[%s732 + $0x8] sm:$0xff] %vm2080, %v2036
        %2130 = vst.msk [vmem:[%s737] sm:$0xff] %vm2121, %v2064
        %2131 = vst.msk [vmem:[%s737 + $0x8] sm:$0xff] %vm2121, %v2079
        %2132 = vst.msk [vmem:[%s742] sm:$0xff] %vm2121, %v2105
        %2133 = vst.msk [vmem:[%s742 + $0x8] sm:$0xff] %vm2121, %v2120
        %p2134 = scmp.lt.s32.totalorder %s37, 1
        %s2135 = scalar_select %p2134, %s37, 1
        %s2136 = smul.addr %s2135, 2
        %s2137 = smul.addr %s2136, 8
        %s2138 = scalar_lea.vmem %s17, %s2137
        %p2139 = scmp.lt.s32.totalorder %s37, 1
        %s2140 = scalar_select %p2139, %s37, 1
        %s2141 = smul.addr %s2140, 2
        %s2142 = smul.addr %s2141, 8
        %s2143 = scalar_lea.vmem %s18, %s2142
        %s2144 = sand.u32 %s459, 1
        %s2145 = scalar_lea.sflag [#allocation3], %s2144
        %s2146 = sand.u32 %s459, 1
        %s2147 = smul.addr %s2146, 16
        %s2148 = scalar_lea.vmem [#allocation2], %s2147
        %p2149 = scmp.lt.s32.totalorder %s37, 1
        %s2150 = scalar_select %p2149, %s37, 1
        %s2151 = smul.addr %s2150, 2
        %s2152 = smul.addr %s2151, 8
        %s2153 = scalar_lea.vmem %s20, %s2152
        %p2154 = scmp.lt.s32.totalorder %s37, 1
        %s2155 = scalar_select %p2154, %s37, 1
        %s2156 = smul.addr %s2155, 2
        %s2157 = smul.addr %s2156, 8
        %s2158 = scalar_lea.vmem %s21, %s2157
        %p2159 = scmp.lt.s32.totalorder %s37, 1
        %s2160 = scalar_select %p2159, %s37, 1
        %s2161 = smul.addr %s2160, 2
        %s2162 = smul.addr %s2161, 8
        %s2163 = scalar_lea.vmem %s22, %s2162
        // Predicated region
        $region89: #{baseline_forward_predict.1} parent=87 // pred_check
          %p2164 = pneg %p417
        $region90: #{baseline_forward_predict.1} parent=87 // pred_check_branch
          %2166 = sbr.rel (%p2164) target = $region92
        $region91: #{baseline_forward_predict.1} parent=87 // pred_region
          _
        $region92: #{baseline_forward_predict.1} parent=87 // pred_fallthru
          _
        // Predicated region
        $region93: #{baseline_forward_predict.1} parent=87 // pred_check
          %p2167 = pneg %p443
        $region94: #{baseline_forward_predict.1} parent=87 // pred_check_branch
          %2169 = sbr.rel (%p2167) target = $region96
        $region95: #{baseline_forward_predict.1} parent=87 // pred_region
          _
        $region96: #{baseline_forward_predict.1} parent=87 // pred_fallthru
          _
        // Predicated region
        $region97: #{baseline_forward_predict.1} parent=87 // pred_check
          %p2170 = pneg %p469
        $region98: #{baseline_forward_predict.1} parent=87 // pred_check_branch
          %2172 = sbr.rel (%p2170) target = $region100
        $region99: #{baseline_forward_predict.1} parent=87 // pred_region
          %s2174 = ssub.s32 256, 256
          %2175 = vsyncadd %s2145, %s2174
          %s2176 = smul.addr %s37, 2
          %s2177 = smul.addr %s2176, 128
          %s2178 = scalar_lea.hbm %s19, %s2177
          %s2179 = sshll.u32 %s2148, 4
          %s2180 = int_to_ptr.vmem [resolvable:$true] %s2179
          %2185 = dma.vmem_to_hbm [thread:$0]  %s2180, 256, %s2178, %s2145, 128, 128, 8
        $region100: #{baseline_forward_predict.1} parent=87 // pred_fallthru
          _
        // Predicated region
        $region101: #{baseline_forward_predict.1} parent=87 // pred_check
          %p2186 = pneg %p495
        $region102: #{baseline_forward_predict.1} parent=87 // pred_check_branch
          %2188 = sbr.rel (%p2186) target = $region104
        $region103: #{baseline_forward_predict.1} parent=87 // pred_region
          _
        $region104: #{baseline_forward_predict.1} parent=87 // pred_fallthru
          _
        // Predicated region
        $region105: #{baseline_forward_predict.1} parent=87 // pred_check
          %p2189 = pneg %p521
        $region106: #{baseline_forward_predict.1} parent=87 // pred_check_branch
          %2191 = sbr.rel (%p2189) target = $region108
        $region107: #{baseline_forward_predict.1} parent=87 // pred_region
          _
        $region108: #{baseline_forward_predict.1} parent=87 // pred_fallthru
          _
        // Predicated region
        $region109: #{baseline_forward_predict.1} parent=87 // pred_check
          %p2192 = pneg %p547
        $region110: #{baseline_forward_predict.1} parent=87 // pred_check_branch
          %2194 = sbr.rel (%p2192) target = $region112
        $region111: #{baseline_forward_predict.1} parent=87 // pred_region
          _
        $region112: #{baseline_forward_predict.1} parent=87 // pred_fallthru
          _
      $region88: #{baseline_forward_predict.1} parent=5 // pred_fallthru
        _
      %p2195 = scmp.le.s32.totalorder 2, %s32
      // Predicated region
      $region113: #{baseline_forward_predict.1} parent=5 // pred_check
        %p2196 = pneg %p2195
      $region114: #{baseline_forward_predict.1} parent=5 // pred_check_branch
        %2198 = sbr.rel (%p2196) target = $region116
      $region115: #{baseline_forward_predict.1} parent=5 // pred_region
        %s2199 = ssub.s32 %s32, 2
        // Predicated region
        $region117: #{baseline_forward_predict.1} parent=115 // pred_check
          %p2200 = pneg %p423
        $region118: #{baseline_forward_predict.1} parent=115 // pred_check_branch
          %2202 = sbr.rel (%p2200) target = $region120
        $region119: #{baseline_forward_predict.1} parent=115 // pred_region
          %p2203 = scmp.lt.s32.totalorder %s38, 1
          %s2204 = scalar_select %p2203, %s38, 1
          %s2205 = smul.addr %s2204, 2
          %s2206 = smul.addr %s2205, 8
          %s2207 = scalar_lea.vmem %s17, %s2206
        $region120: #{baseline_forward_predict.1} parent=115 // pred_fallthru
          _
        // Predicated region
        $region121: #{baseline_forward_predict.1} parent=115 // pred_check
          %p2208 = pneg %p449
        $region122: #{baseline_forward_predict.1} parent=115 // pred_check_branch
          %2210 = sbr.rel (%p2208) target = $region124
        $region123: #{baseline_forward_predict.1} parent=115 // pred_region
          %p2211 = scmp.lt.s32.totalorder %s38, 1
          %s2212 = scalar_select %p2211, %s38, 1
          %s2213 = smul.addr %s2212, 2
          %s2214 = smul.addr %s2213, 8
          %s2215 = scalar_lea.vmem %s18, %s2214
        $region124: #{baseline_forward_predict.1} parent=115 // pred_fallthru
          _
        // Predicated region
        $region125: #{baseline_forward_predict.1} parent=115 // pred_check
          %p2216 = pneg %p475
        $region126: #{baseline_forward_predict.1} parent=115 // pred_check_branch
          %2218 = sbr.rel (%p2216) target = $region128
        $region127: #{baseline_forward_predict.1} parent=115 // pred_region
          %s2219 = sand.u32 %s460, 1
          %s2220 = scalar_lea.sflag [#allocation3], %s2219
          %s2221 = sand.u32 %s460, 1
          %s2222 = smul.addr %s2221, 16
          %s2223 = scalar_lea.vmem [#allocation2], %s2222
          %2224 = dma.done %s2220, 256
        $region128: #{baseline_forward_predict.1} parent=115 // pred_fallthru
          _
        // Predicated region
        $region129: #{baseline_forward_predict.1} parent=115 // pred_check
          %p2225 = pneg %p501
        $region130: #{baseline_forward_predict.1} parent=115 // pred_check_branch
          %2227 = sbr.rel (%p2225) target = $region132
        $region131: #{baseline_forward_predict.1} parent=115 // pred_region
          %p2228 = scmp.lt.s32.totalorder %s38, 1
          %s2229 = scalar_select %p2228, %s38, 1
          %s2230 = smul.addr %s2229, 2
          %s2231 = smul.addr %s2230, 8
          %s2232 = scalar_lea.vmem %s20, %s2231
        $region132: #{baseline_forward_predict.1} parent=115 // pred_fallthru
          _
        // Predicated region
        $region133: #{baseline_forward_predict.1} parent=115 // pred_check
          %p2233 = pneg %p527
        $region134: #{baseline_forward_predict.1} parent=115 // pred_check_branch
          %2235 = sbr.rel (%p2233) target = $region136
        $region135: #{baseline_forward_predict.1} parent=115 // pred_region
          %p2236 = scmp.lt.s32.totalorder %s38, 1
          %s2237 = scalar_select %p2236, %s38, 1
          %s2238 = smul.addr %s2237, 2
          %s2239 = smul.addr %s2238, 8
          %s2240 = scalar_lea.vmem %s21, %s2239
        $region136: #{baseline_forward_predict.1} parent=115 // pred_fallthru
          _
        // Predicated region
        $region137: #{baseline_forward_predict.1} parent=115 // pred_check
          %p2241 = pneg %p553
        $region138: #{baseline_forward_predict.1} parent=115 // pred_check_branch
          %2243 = sbr.rel (%p2241) target = $region140
        $region139: #{baseline_forward_predict.1} parent=115 // pred_region
          %p2244 = scmp.lt.s32.totalorder %s38, 1
          %s2245 = scalar_select %p2244, %s38, 1
          %s2246 = smul.addr %s2245, 2
          %s2247 = smul.addr %s2246, 8
          %s2248 = scalar_lea.vmem %s22, %s2247
        $region140: #{baseline_forward_predict.1} parent=115 // pred_fallthru
          _
      $region116: #{baseline_forward_predict.1} parent=5 // pred_fallthru
        _
    $region6: #{baseline_forward_predict.1} parent=1 // loop_footer
      %s36 = sadd.s32 1, %s32
    $region7: #{baseline_forward_predict.1} parent=1 // loop_footer_branch
      %31 = sbr.rel target = $region3
    $region8: #{baseline_forward_predict.1} parent=1 // loop_exit
      _
    %2249 = vsyncpa [#allocation3], 1
    %s2250 = scalar_lea.sflag [#allocation3], 1
    %2251 = vsyncpa %s2250, 1

</llo_original>
